<compile_context>
chip_gen: v7x
topology: tpu7x:2x2x1
jax: 0.10.0
libtpu: 0.0.40
codegen_flags: <defaults>
</compile_context>

<pallas_src>
import functools
import math

import jax
import jax.numpy as jnp
from jax.experimental import pallas as pl
from jax.experimental.pallas import tpu as pltpu


def _global_attention_kernel(locx_ref, glox_ref,
                             wq_ref, bq_ref, wkv_ref, bkv_ref,
                             wo_ref, bo_ref, out_ref,
                             q_scr, acc_scr, m_scr, l_scr,
                             *, num_heads, dpad, scale):
    ki = pl.program_id(2)
    npd = num_heads * dpad

    # ---- first k-tile of this (batch, q-tile): Q projection + stat init ----
    @pl.when(ki == 0)
    def _init():
        q = jnp.dot(locx_ref[0], wq_ref[...],
                    preferred_element_type=jnp.float32) + bq_ref[...]
        q_scr[...] = (q * scale).astype(q_scr.dtype)          # (tq, nh*128) bf16
        m_scr[...] = jnp.full(m_scr.shape, -jnp.inf, m_scr.dtype)
        l_scr[...] = jnp.zeros(l_scr.shape, l_scr.dtype)
        acc_scr[...] = jnp.zeros(acc_scr.shape, acc_scr.dtype)

    # ---- per-Sk-tile fused K|V projection (only one tile ever resident) ----
    kv = jnp.dot(glox_ref[0], wkv_ref[...],
                 preferred_element_type=jnp.float32) + bkv_ref[...]
    kv = kv.astype(jnp.bfloat16)                               # (tk, 2*nh*128)

    # ---- per-head online-softmax attention (all slices 128-lane aligned) ----
    # TODO(synk): lax.fori_loop over heads at production num_heads.
    for h in range(num_heads):
        sl = slice(h * dpad, (h + 1) * dpad)
        q_h = q_scr[:, sl]                                     # (tq, 128) bf16
        k_h = kv[:, h * dpad:(h + 1) * dpad]                   # (tk, 128) bf16
        v_h = kv[:, npd + h * dpad:npd + (h + 1) * dpad]       # (tk, 128) bf16

        s = jnp.einsum('qd,kd->qk', q_h, k_h,
                       preferred_element_type=jnp.float32)     # (tq, tk) f32

        m_prev = m_scr[h]                                      # (tq, 1)
        l_prev = l_scr[h]
        m_new = jnp.maximum(m_prev, jnp.max(s, axis=-1, keepdims=True))
        alpha = jnp.exp(m_prev - m_new)                        # f32
        p = jnp.exp(s - m_new)                                 # f32
        l_scr[h] = alpha * l_prev + jnp.sum(p, axis=-1, keepdims=True)
        m_scr[h] = m_new
        acc_scr[:, sl] = acc_scr[:, sl] * alpha + jnp.dot(
            p.astype(jnp.bfloat16), v_h, preferred_element_type=jnp.float32)

    # ---- last k-tile: normalize, single fused output projection, store ----
    @pl.when(ki == pl.num_programs(2) - 1)
    def _finalize():
        parts = []
        for h in range(num_heads):
            inv_l = pl.reciprocal(l_scr[h], approx=True)       # (tq, 1)
            parts.append((acc_scr[:, h * dpad:(h + 1) * dpad] * inv_l)
                         .astype(jnp.bfloat16))
        ctx = jnp.concatenate(parts, axis=-1)                   # (tq, nh*128)
        out = jnp.dot(ctx, wo_ref[...],
                      preferred_element_type=jnp.float32) + bo_ref[...]
        out_ref[0] = out.astype(out_ref.dtype)                  # lane-dense


def global_attention(locx, glox, params, *, num_heads, tq=None, tk=None):
    B, Sq, H = locx.shape
    _, Sk, _ = glox.shape
    head_dim = H // num_heads
    wq, bq, wk, bk, wv, bv, wo, bo = params

    dpad = ((head_dim + 127) // 128) * 128      # per-head lane tile (>= 128)
    npd = num_heads * dpad
    h_pad = ((H + 127) // 128) * 128

    # At production sizes choose tq >= 256 (v6e/v7x MXU) and a larger tk.
    if tq is None:
        tq = min(Sq, 256)
    if tk is None:
        tk = min(Sk, 512)
    assert Sq % tq == 0 and Sk % tk == 0

    # ---- wrapper-side head-padded / lane-aligned weight layouts (one-time) ----
    def pad_heads_cols(w):      # (..., nh*hd) -> (..., nh*dpad), zeros in pad
        lead = w.shape[:-1]
        w = w.reshape(*lead, num_heads, head_dim)
        w = jnp.pad(w, [(0, 0)] * len(lead) + [(0, 0), (0, dpad - head_dim)])
        return w.reshape(*lead, npd)

    wq_hp = pad_heads_cols(wq).astype(jnp.bfloat16)                  # (H, npd)
    bq_hp = pad_heads_cols(bq)                                        # (1, npd) f32
    wkv_hp = jnp.concatenate([pad_heads_cols(wk), pad_heads_cols(wv)],
                             axis=-1).astype(jnp.bfloat16)            # (H, 2*npd)
    bkv_hp = jnp.concatenate([pad_heads_cols(bk), pad_heads_cols(bv)],
                             axis=-1)                                 # (1, 2*npd) f32

    wo_hp = wo.reshape(num_heads, head_dim, H)
    wo_hp = jnp.pad(wo_hp, ((0, 0), (0, dpad - head_dim), (0, h_pad - H)))
    wo_hp = wo_hp.reshape(npd, h_pad).astype(jnp.bfloat16)            # (npd, h_pad)
    bo_p = jnp.pad(bo, ((0, 0), (0, h_pad - H)))                      # (1, h_pad) f32

    locx_b = locx.astype(jnp.bfloat16)
    glox_b = glox.astype(jnp.bfloat16)

    grid = (B, Sq // tq, Sk // tk)

    kernel = functools.partial(
        _global_attention_kernel,
        num_heads=num_heads, dpad=dpad, scale=1.0 / math.sqrt(head_dim))

    flops = (2 * B * Sq * H * npd                      # Q projection
             + 2 * B * Sk * H * 2 * npd                # fused K/V projection
             + 4 * B * num_heads * Sq * Sk * dpad      # scores + PV
             + 2 * B * Sq * npd * h_pad)               # output projection
    transcend = B * num_heads * Sq * (Sk + 2 * (Sk // tk) + 1)
    bytes_accessed = (2 * (locx_b.size + glox_b.size + wq_hp.size
                           + wkv_hp.size + wo_hp.size)
                      + 4 * (bq_hp.size + bkv_hp.size + bo_p.size
                             + B * Sq * h_pad))

    in_specs = [
        pl.BlockSpec((1, tq, H), lambda b, qi, ki: (b, qi, 0)),       # locx
        pl.BlockSpec((1, tk, H), lambda b, qi, ki: (b, ki, 0)),       # glox
        pl.BlockSpec((H, npd), lambda b, qi, ki: (0, 0)),             # wq
        pl.BlockSpec((1, npd), lambda b, qi, ki: (0, 0)),             # bq
        pl.BlockSpec((H, 2 * npd), lambda b, qi, ki: (0, 0)),         # wkv
        pl.BlockSpec((1, 2 * npd), lambda b, qi, ki: (0, 0)),         # bkv
        pl.BlockSpec((npd, h_pad), lambda b, qi, ki: (0, 0)),         # wo
        pl.BlockSpec((1, h_pad), lambda b, qi, ki: (0, 0)),           # bo
    ]
    out_specs = pl.BlockSpec((1, tq, h_pad), lambda b, qi, ki: (b, qi, 0))
    scratch_shapes = [
        pltpu.VMEM((tq, npd), jnp.bfloat16),           # scaled Q (head-padded)
        pltpu.VMEM((tq, npd), jnp.float32),            # context accumulator
        pltpu.VMEM((num_heads, tq, 1), jnp.float32),   # running max
        pltpu.VMEM((num_heads, tq, 1), jnp.float32),   # running sum
    ]

    out_p = pl.pallas_call(
        kernel,
        out_shape=jax.ShapeDtypeStruct((B, Sq, h_pad), jnp.float32),
        grid=grid,
        in_specs=in_specs,
        out_specs=out_specs,
        scratch_shapes=scratch_shapes,
        cost_estimate=pl.CostEstimate(flops=int(flops),
                                      transcendentals=int(transcend),
                                      bytes_accessed=int(bytes_accessed)),
        compiler_params=pltpu.CompilerParams(
            dimension_semantics=("parallel", "parallel", "arbitrary"),
            vmem_limit_bytes=32 * 1024 * 1024),   # raise further for prod tiles
    )(locx_b, glox_b, wq_hp, bq_hp, wkv_hp, bkv_hp, wo_hp, bo_p)

    # Strip lane padding.
    return out_p[:, :, :H]


def _reference(locx, glox, params, *, num_heads):
    """Pure-JAX f32 reference matching the PyTorch forward (dropout=0)."""
    wq, bq, wk, bk, wv, bv, wo, bo = params
    B, Sq, H = locx.shape
    Sk = glox.shape[1]
    hd = H // num_heads
    q = locx @ wq + bq
    k = glox @ wk + bk
    v = glox @ wv + bv
    q = q.reshape(B, Sq, num_heads, hd).transpose(0, 2, 1, 3)
    k = k.reshape(B, Sk, num_heads, hd).transpose(0, 2, 1, 3)
    v = v.reshape(B, Sk, num_heads, hd).transpose(0, 2, 1, 3)
    s = jnp.einsum("bhqd,bhkd->bhqk", q, k) / math.sqrt(hd)
    p = jax.nn.softmax(s, axis=-1)
    ctx = jnp.einsum("bhqk,bhkd->bhqd", p, v)
    ctx = ctx.transpose(0, 2, 1, 3).reshape(B, Sq, H)
    return ctx @ wo + bo


def _init_params(key, hidden_size):
    """Deterministic synthetic params; weights stored as [H_in, H_out]."""
    keys = jax.random.split(key, 8)
    lim = 1.0 / math.sqrt(hidden_size)
    def w(k):
        return jax.random.uniform(k, (hidden_size, hidden_size), jnp.float32, -lim, lim)
    def b(k):
        return jax.random.uniform(k, (1, hidden_size), jnp.float32, -lim, lim)
    return (w(keys[0]), b(keys[1]),   # query
            w(keys[2]), b(keys[3]),   # key
            w(keys[4]), b(keys[5]),   # value
            w(keys[6]), b(keys[7]))   # out


if __name__ == "__main__":
    B = 2
    HIDDEN = 32
    NUM_HEADS = 4      # head_dim = 8
    SQ = 32            # local (query) sequence length
    SK = 32            # global (key/value) sequence length
    TQ = 16            # query tile  -> 2 parallel q-tiles per batch
    TK = 16            # kv tile     -> 2 online-softmax steps per q-tile

    root = jax.random.PRNGKey(0)
    k_loc, k_glo, k_par = jax.random.split(root, 3)
    locx = jax.random.normal(k_loc, (B, SQ, HIDDEN), jnp.float32)
    glox = jax.random.normal(k_glo, (B, SK, HIDDEN), jnp.float32)
    params = _init_params(k_par, HIDDEN)

    out = global_attention(locx, glox, params, num_heads=NUM_HEADS, tq=TQ, tk=TK)
    out = jax.block_until_ready(out)

    ref = _reference(locx, glox, params, num_heads=NUM_HEADS)
    assert out.shape == (B, SQ, HIDDEN)
    # Tolerance covers bf16 MXU operands (f32 accumulation) and the EUP
    # approximate-reciprocal softmax denominator.
    assert jnp.allclose(out, ref, atol=3e-2, rtol=3e-2), "mismatch vs reference"

    print("KERNEL_OK")
</pallas_src>

<mosaic_0001>
module attributes {stable_mosaic.version = 11 : i64} {
  func.func @_global_attention_kernel(%arg0: i32, %arg1: i32, %arg2: i32, %arg3: memref<1x16x32xbf16, #tpu.memory_space<vmem>>, %arg4: memref<1x16x32xbf16, #tpu.memory_space<vmem>>, %arg5: memref<32x512xbf16, #tpu.memory_space<vmem>>, %arg6: memref<1x512xf32, #tpu.memory_space<vmem>>, %arg7: memref<32x1024xbf16, #tpu.memory_space<vmem>>, %arg8: memref<1x1024xf32, #tpu.memory_space<vmem>>, %arg9: memref<512x128xbf16, #tpu.memory_space<vmem>>, %arg10: memref<1x128xf32, #tpu.memory_space<vmem>>, %arg11: memref<1x16x128xf32, #tpu.memory_space<vmem>>, %arg12: memref<16x512xbf16, #tpu.memory_space<vmem>>, %arg13: memref<16x512xf32, #tpu.memory_space<vmem>>, %arg14: memref<4x16x1xf32, #tpu.memory_space<vmem>>, %arg15: memref<4x16x1xf32, #tpu.memory_space<vmem>>) attributes {dimension_semantics = [#tpu.dimension_semantics<parallel>, #tpu.dimension_semantics<parallel>, #tpu.dimension_semantics<arbitrary>], iteration_bounds = array<i64: 2, 2, 2>, scalar_prefetch = 0 : i64, scratch_operands = 4 : i64, tpu.core_type = #tpu.core_type<tc>, window_params = [{transform_indices = @transform_0, window_bounds = array<i64: 1, 16, 32>}, {transform_indices = @transform_1, window_bounds = array<i64: 1, 16, 32>}, {pipeline_mode = #tpu.pipeline_mode<synchronous>, transform_indices = @transform_2, window_bounds = array<i64: 32, 512>}, {pipeline_mode = #tpu.pipeline_mode<synchronous>, transform_indices = @transform_3, window_bounds = array<i64: 1, 512>}, {pipeline_mode = #tpu.pipeline_mode<synchronous>, transform_indices = @transform_4, window_bounds = array<i64: 32, 1024>}, {pipeline_mode = #tpu.pipeline_mode<synchronous>, transform_indices = @transform_5, window_bounds = array<i64: 1, 1024>}, {pipeline_mode = #tpu.pipeline_mode<synchronous>, transform_indices = @transform_6, window_bounds = array<i64: 512, 128>}, {pipeline_mode = #tpu.pipeline_mode<synchronous>, transform_indices = @transform_7, window_bounds = array<i64: 1, 128>}, {transform_indices = @transform_8, window_bounds = array<i64: 1, 16, 128>}]} {
    %c0_i32 = arith.constant 0 : i32
    %0 = arith.cmpi eq, %arg2, %c0_i32 : i32
    %1 = arith.extui %0 : i1 to i32
    %c0_i32_0 = arith.constant 0 : i32
    %2 = arith.cmpi ne, %1, %c0_i32_0 : i32
    scf.if %2 {
      %c0_90 = arith.constant 0 : index
      %c0_91 = arith.constant 0 : index
      %c0_92 = arith.constant 0 : index
      %146 = vector.load %arg3[%c0_90, %c0_91, %c0_92] : memref<1x16x32xbf16, #tpu.memory_space<vmem>>, vector<1x16x32xbf16>
      %147 = vector.shape_cast %146 : vector<1x16x32xbf16> to vector<16x32xbf16>
      %c0_93 = arith.constant 0 : index
      %c0_94 = arith.constant 0 : index
      %148 = vector.load %arg5[%c0_93, %c0_94] : memref<32x512xbf16, #tpu.memory_space<vmem>>, vector<32x512xbf16>
      %cst_95 = arith.constant dense<0.000000e+00> : vector<16x512xf32>
      %149 = tpu.matmul %147, %148, %cst_95 {dimension_numbers = #tpu.dot_dimension_numbers<[1], [0], [0], [1], [0, 0, 1, 1], [], []>} : vector<16x32xbf16>, vector<32x512xbf16>, vector<16x512xf32> -> vector<16x512xf32>
      %c0_96 = arith.constant 0 : index
      %c0_97 = arith.constant 0 : index
      %150 = vector.load %arg6[%c0_96, %c0_97] : memref<1x512xf32, #tpu.memory_space<vmem>>, vector<1x512xf32>
      %151 = vector.broadcast %150 : vector<1x512xf32> to vector<16x512xf32>
      %152 = arith.addf %149, %151 : vector<16x512xf32>
      %cst_98 = arith.constant 0.353553385 : f32
      %153 = vector.broadcast %cst_98 : f32 to vector<16x512xf32>
      %154 = arith.mulf %152, %153 : vector<16x512xf32>
      %155 = arith.truncf %154 : vector<16x512xf32> to vector<16x512xbf16>
      %c0_99 = arith.constant 0 : index
      %c0_100 = arith.constant 0 : index
      %156 = vector.load %arg12[%c0_99, %c0_100] : memref<16x512xbf16, #tpu.memory_space<vmem>>, vector<16x512xbf16>
      tpu.vector_store %arg12[%c0_99, %c0_100], %155 {strides = array<i32>} : memref<16x512xbf16, #tpu.memory_space<vmem>>, vector<16x512xbf16>,
      %cst_101 = arith.constant 0xFF800000 : f32
      %157 = vector.broadcast %cst_101 : f32 to vector<4x16x1xf32>
      %c0_102 = arith.constant 0 : index
      %c0_103 = arith.constant 0 : index
      %c0_104 = arith.constant 0 : index
      %158 = vector.load %arg14[%c0_102, %c0_103, %c0_104] : memref<4x16x1xf32, #tpu.memory_space<vmem>>, vector<4x16x1xf32>
      tpu.vector_store %arg14[%c0_102, %c0_103, %c0_104], %157 {strides = array<i32>} : memref<4x16x1xf32, #tpu.memory_space<vmem>>, vector<4x16x1xf32>,
      %cst_105 = arith.constant 0.000000e+00 : f32
      %159 = vector.broadcast %cst_105 : f32 to vector<4x16x1xf32>
      %c0_106 = arith.constant 0 : index
      %c0_107 = arith.constant 0 : index
      %c0_108 = arith.constant 0 : index
      %160 = vector.load %arg15[%c0_106, %c0_107, %c0_108] : memref<4x16x1xf32, #tpu.memory_space<vmem>>, vector<4x16x1xf32>
      tpu.vector_store %arg15[%c0_106, %c0_107, %c0_108], %159 {strides = array<i32>} : memref<4x16x1xf32, #tpu.memory_space<vmem>>, vector<4x16x1xf32>,
      %cst_109 = arith.constant 0.000000e+00 : f32
      %161 = vector.broadcast %cst_109 : f32 to vector<16x512xf32>
      %c0_110 = arith.constant 0 : index
      %c0_111 = arith.constant 0 : index
      %162 = vector.load %arg13[%c0_110, %c0_111] : memref<16x512xf32, #tpu.memory_space<vmem>>, vector<16x512xf32>
      tpu.vector_store %arg13[%c0_110, %c0_111], %161 {strides = array<i32>} : memref<16x512xf32, #tpu.memory_space<vmem>>, vector<16x512xf32>,
    } else {
    }
    %c0 = arith.constant 0 : index
    %c0_1 = arith.constant 0 : index
    %c0_2 = arith.constant 0 : index
    %3 = vector.load %arg4[%c0, %c0_1, %c0_2] : memref<1x16x32xbf16, #tpu.memory_space<vmem>>, vector<1x16x32xbf16>
    %4 = vector.shape_cast %3 : vector<1x16x32xbf16> to vector<16x32xbf16>
    %c0_3 = arith.constant 0 : index
    %c0_4 = arith.constant 0 : index
    %5 = vector.load %arg7[%c0_3, %c0_4] : memref<32x1024xbf16, #tpu.memory_space<vmem>>, vector<32x1024xbf16>
    %cst = arith.constant dense<0.000000e+00> : vector<16x1024xf32>
    %6 = tpu.matmul %4, %5, %cst {dimension_numbers = #tpu.dot_dimension_numbers<[1], [0], [0], [1], [0, 0, 1, 1], [], []>} : vector<16x32xbf16>, vector<32x1024xbf16>, vector<16x1024xf32> -> vector<16x1024xf32>
    %c0_5 = arith.constant 0 : index
    %c0_6 = arith.constant 0 : index
    %7 = vector.load %arg8[%c0_5, %c0_6] : memref<1x1024xf32, #tpu.memory_space<vmem>>, vector<1x1024xf32>
    %8 = vector.broadcast %7 : vector<1x1024xf32> to vector<16x1024xf32>
    %9 = arith.addf %6, %8 : vector<16x1024xf32>
    %10 = arith.truncf %9 : vector<16x1024xf32> to vector<16x1024xbf16>
    %c0_7 = arith.constant 0 : index
    %c0_8 = arith.constant 0 : index
    %11 = vector.load %arg12[%c0_7, %c0_8] : memref<16x512xbf16, #tpu.memory_space<vmem>>, vector<16x128xbf16>
    %12 = vector.extract_strided_slice %10 {offsets = [0, 0], sizes = [16, 128], strides = [1, 1]} : vector<16x1024xbf16> to vector<16x128xbf16>
    %13 = vector.extract_strided_slice %10 {offsets = [0, 512], sizes = [16, 128], strides = [1, 1]} : vector<16x1024xbf16> to vector<16x128xbf16>
    "tpu.trace_start"() <{level = 10 : i32, message = "qd,kd->qk"}> : () -> ()
    %cst_9 = arith.constant dense<0.000000e+00> : vector<16x16xf32>
    %14 = tpu.matmul %11, %12, %cst_9 {dimension_numbers = #tpu.dot_dimension_numbers<[1], [1], [0], [0], [0, 0, 1, 0], [], []>} : vector<16x128xbf16>, vector<16x128xbf16>, vector<16x16xf32> -> vector<16x16xf32>
    "tpu.trace_stop"() : () -> ()
    %c0_10 = arith.constant 0 : index
    %c0_11 = arith.constant 0 : index
    %c0_12 = arith.constant 0 : index
    %15 = vector.load %arg14[%c0_10, %c0_11, %c0_12] : memref<4x16x1xf32, #tpu.memory_space<vmem>>, vector<1x16x1xf32>
    %16 = vector.shape_cast %15 : vector<1x16x1xf32> to vector<16x1xf32>
    %c0_13 = arith.constant 0 : index
    %c0_14 = arith.constant 0 : index
    %c0_15 = arith.constant 0 : index
    %17 = vector.load %arg15[%c0_13, %c0_14, %c0_15] : memref<4x16x1xf32, #tpu.memory_space<vmem>>, vector<1x16x1xf32>
    %18 = vector.shape_cast %17 : vector<1x16x1xf32> to vector<16x1xf32>
    %cst_16 = arith.constant dense<0xFF800000> : vector<16xf32>
    %19 = vector.multi_reduction <maximumf>, %14, %cst_16 [1] : vector<16x16xf32> to vector<16xf32>
    %20 = vector.shape_cast %19 : vector<16xf32> to vector<16x1xf32>
    %21 = arith.maximumf %16, %20 : vector<16x1xf32>
    %22 = arith.subf %16, %21 : vector<16x1xf32>
    %23 = math.exp %22 : vector<16x1xf32>
    %24 = vector.broadcast %21 : vector<16x1xf32> to vector<16x16xf32>
    %25 = arith.subf %14, %24 : vector<16x16xf32>
    %26 = math.exp %25 : vector<16x16xf32>
    %27 = arith.mulf %23, %18 : vector<16x1xf32>
    %cst_17 = arith.constant dense<0.000000e+00> : vector<16xf32>
    %28 = vector.multi_reduction <add>, %26, %cst_17 [1] : vector<16x16xf32> to vector<16xf32>
    %29 = vector.shape_cast %28 : vector<16xf32> to vector<16x1xf32>
    %30 = arith.addf %27, %29 : vector<16x1xf32>
    %c0_18 = arith.constant 0 : index
    %c0_19 = arith.constant 0 : index
    %c0_20 = arith.constant 0 : index
    %31 = vector.load %arg15[%c0_18, %c0_19, %c0_20] : memref<4x16x1xf32, #tpu.memory_space<vmem>>, vector<1x16x1xf32>
    %32 = vector.shape_cast %31 : vector<1x16x1xf32> to vector<16x1xf32>
    %33 = vector.shape_cast %30 : vector<16x1xf32> to vector<1x16x1xf32>
    tpu.vector_store %arg15[%c0_18, %c0_19, %c0_20], %33 {strides = array<i32>} : memref<4x16x1xf32, #tpu.memory_space<vmem>>, vector<1x16x1xf32>,
    %c0_21 = arith.constant 0 : index
    %c0_22 = arith.constant 0 : index
    %c0_23 = arith.constant 0 : index
    %34 = vector.load %arg14[%c0_21, %c0_22, %c0_23] : memref<4x16x1xf32, #tpu.memory_space<vmem>>, vector<1x16x1xf32>
    %35 = vector.shape_cast %34 : vector<1x16x1xf32> to vector<16x1xf32>
    %36 = vector.shape_cast %21 : vector<16x1xf32> to vector<1x16x1xf32>
    tpu.vector_store %arg14[%c0_21, %c0_22, %c0_23], %36 {strides = array<i32>} : memref<4x16x1xf32, #tpu.memory_space<vmem>>, vector<1x16x1xf32>,
    %c0_24 = arith.constant 0 : index
    %c0_25 = arith.constant 0 : index
    %37 = vector.load %arg13[%c0_24, %c0_25] : memref<16x512xf32, #tpu.memory_space<vmem>>, vector<16x128xf32>
    %38 = vector.broadcast %23 : vector<16x1xf32> to vector<16x128xf32>
    %39 = arith.mulf %37, %38 : vector<16x128xf32>
    %40 = arith.truncf %26 : vector<16x16xf32> to vector<16x16xbf16>
    %cst_26 = arith.constant dense<0.000000e+00> : vector<16x128xf32>
    %41 = tpu.matmul %40, %13, %cst_26 {dimension_numbers = #tpu.dot_dimension_numbers<[1], [0], [0], [1], [0, 0, 1, 1], [], []>} : vector<16x16xbf16>, vector<16x128xbf16>, vector<16x128xf32> -> vector<16x128xf32>
    %42 = arith.addf %39, %41 : vector<16x128xf32>
    %c0_27 = arith.constant 0 : index
    %c0_28 = arith.constant 0 : index
    %43 = vector.load %arg13[%c0_27, %c0_28] : memref<16x512xf32, #tpu.memory_space<vmem>>, vector<16x128xf32>
    tpu.vector_store %arg13[%c0_27, %c0_28], %42 {strides = array<i32>} : memref<16x512xf32, #tpu.memory_space<vmem>>, vector<16x128xf32>,
    %c0_29 = arith.constant 0 : index
    %c128 = arith.constant 128 : index
    %44 = vector.load %arg12[%c0_29, %c128] : memref<16x512xbf16, #tpu.memory_space<vmem>>, vector<16x128xbf16>
    %45 = vector.extract_strided_slice %10 {offsets = [0, 128], sizes = [16, 128], strides = [1, 1]} : vector<16x1024xbf16> to vector<16x128xbf16>
    %46 = vector.extract_strided_slice %10 {offsets = [0, 640], sizes = [16, 128], strides = [1, 1]} : vector<16x1024xbf16> to vector<16x128xbf16>
    "tpu.trace_start"() <{level = 10 : i32, message = "qd,kd->qk"}> : () -> ()
    %cst_30 = arith.constant dense<0.000000e+00> : vector<16x16xf32>
    %47 = tpu.matmul %44, %45, %cst_30 {dimension_numbers = #tpu.dot_dimension_numbers<[1], [1], [0], [0], [0, 0, 1, 0], [], []>} : vector<16x128xbf16>, vector<16x128xbf16>, vector<16x16xf32> -> vector<16x16xf32>
    "tpu.trace_stop"() : () -> ()
    %c1 = arith.constant 1 : index
    %c0_31 = arith.constant 0 : index
    %c0_32 = arith.constant 0 : index
    %48 = vector.load %arg14[%c1, %c0_31, %c0_32] : memref<4x16x1xf32, #tpu.memory_space<vmem>>, vector<1x16x1xf32>
    %49 = vector.shape_cast %48 : vector<1x16x1xf32> to vector<16x1xf32>
    %c1_33 = arith.constant 1 : index
    %c0_34 = arith.constant 0 : index
    %c0_35 = arith.constant 0 : index
    %50 = vector.load %arg15[%c1_33, %c0_34, %c0_35] : memref<4x16x1xf32, #tpu.memory_space<vmem>>, vector<1x16x1xf32>
    %51 = vector.shape_cast %50 : vector<1x16x1xf32> to vector<16x1xf32>
    %cst_36 = arith.constant dense<0xFF800000> : vector<16xf32>
    %52 = vector.multi_reduction <maximumf>, %47, %cst_36 [1] : vector<16x16xf32> to vector<16xf32>
    %53 = vector.shape_cast %52 : vector<16xf32> to vector<16x1xf32>
    %54 = arith.maximumf %49, %53 : vector<16x1xf32>
    %55 = arith.subf %49, %54 : vector<16x1xf32>
    %56 = math.exp %55 : vector<16x1xf32>
    %57 = vector.broadcast %54 : vector<16x1xf32> to vector<16x16xf32>
    %58 = arith.subf %47, %57 : vector<16x16xf32>
    %59 = math.exp %58 : vector<16x16xf32>
    %60 = arith.mulf %56, %51 : vector<16x1xf32>
    %cst_37 = arith.constant dense<0.000000e+00> : vector<16xf32>
    %61 = vector.multi_reduction <add>, %59, %cst_37 [1] : vector<16x16xf32> to vector<16xf32>
    %62 = vector.shape_cast %61 : vector<16xf32> to vector<16x1xf32>
    %63 = arith.addf %60, %62 : vector<16x1xf32>
    %c1_38 = arith.constant 1 : index
    %c0_39 = arith.constant 0 : index
    %c0_40 = arith.constant 0 : index
    %64 = vector.load %arg15[%c1_38, %c0_39, %c0_40] : memref<4x16x1xf32, #tpu.memory_space<vmem>>, vector<1x16x1xf32>
    %65 = vector.shape_cast %64 : vector<1x16x1xf32> to vector<16x1xf32>
    %66 = vector.shape_cast %63 : vector<16x1xf32> to vector<1x16x1xf32>
    tpu.vector_store %arg15[%c1_38, %c0_39, %c0_40], %66 {strides = array<i32>} : memref<4x16x1xf32, #tpu.memory_space<vmem>>, vector<1x16x1xf32>,
    %c1_41 = arith.constant 1 : index
    %c0_42 = arith.constant 0 : index
    %c0_43 = arith.constant 0 : index
    %67 = vector.load %arg14[%c1_41, %c0_42, %c0_43] : memref<4x16x1xf32, #tpu.memory_space<vmem>>, vector<1x16x1xf32>
    %68 = vector.shape_cast %67 : vector<1x16x1xf32> to vector<16x1xf32>
    %69 = vector.shape_cast %54 : vector<16x1xf32> to vector<1x16x1xf32>
    tpu.vector_store %arg14[%c1_41, %c0_42, %c0_43], %69 {strides = array<i32>} : memref<4x16x1xf32, #tpu.memory_space<vmem>>, vector<1x16x1xf32>,
    %c0_44 = arith.constant 0 : index
    %c128_45 = arith.constant 128 : index
    %70 = vector.load %arg13[%c0_44, %c128_45] : memref<16x512xf32, #tpu.memory_space<vmem>>, vector<16x128xf32>
    %71 = vector.broadcast %56 : vector<16x1xf32> to vector<16x128xf32>
    %72 = arith.mulf %70, %71 : vector<16x128xf32>
    %73 = arith.truncf %59 : vector<16x16xf32> to vector<16x16xbf16>
    %cst_46 = arith.constant dense<0.000000e+00> : vector<16x128xf32>
    %74 = tpu.matmul %73, %46, %cst_46 {dimension_numbers = #tpu.dot_dimension_numbers<[1], [0], [0], [1], [0, 0, 1, 1], [], []>} : vector<16x16xbf16>, vector<16x128xbf16>, vector<16x128xf32> -> vector<16x128xf32>
    %75 = arith.addf %72, %74 : vector<16x128xf32>
    %c0_47 = arith.constant 0 : index
    %c128_48 = arith.constant 128 : index
    %76 = vector.load %arg13[%c0_47, %c128_48] : memref<16x512xf32, #tpu.memory_space<vmem>>, vector<16x128xf32>
    tpu.vector_store %arg13[%c0_47, %c128_48], %75 {strides = array<i32>} : memref<16x512xf32, #tpu.memory_space<vmem>>, vector<16x128xf32>,
    %c0_49 = arith.constant 0 : index
    %c256 = arith.constant 256 : index
    %77 = vector.load %arg12[%c0_49, %c256] : memref<16x512xbf16, #tpu.memory_space<vmem>>, vector<16x128xbf16>
    %78 = vector.extract_strided_slice %10 {offsets = [0, 256], sizes = [16, 128], strides = [1, 1]} : vector<16x1024xbf16> to vector<16x128xbf16>
    %79 = vector.extract_strided_slice %10 {offsets = [0, 768], sizes = [16, 128], strides = [1, 1]} : vector<16x1024xbf16> to vector<16x128xbf16>
    "tpu.trace_start"() <{level = 10 : i32, message = "qd,kd->qk"}> : () -> ()
    %cst_50 = arith.constant dense<0.000000e+00> : vector<16x16xf32>
    %80 = tpu.matmul %77, %78, %cst_50 {dimension_numbers = #tpu.dot_dimension_numbers<[1], [1], [0], [0], [0, 0, 1, 0], [], []>} : vector<16x128xbf16>, vector<16x128xbf16>, vector<16x16xf32> -> vector<16x16xf32>
    "tpu.trace_stop"() : () -> ()
    %c2 = arith.constant 2 : index
    %c0_51 = arith.constant 0 : index
    %c0_52 = arith.constant 0 : index
    %81 = vector.load %arg14[%c2, %c0_51, %c0_52] : memref<4x16x1xf32, #tpu.memory_space<vmem>>, vector<1x16x1xf32>
    %82 = vector.shape_cast %81 : vector<1x16x1xf32> to vector<16x1xf32>
    %c2_53 = arith.constant 2 : index
    %c0_54 = arith.constant 0 : index
    %c0_55 = arith.constant 0 : index
    %83 = vector.load %arg15[%c2_53, %c0_54, %c0_55] : memref<4x16x1xf32, #tpu.memory_space<vmem>>, vector<1x16x1xf32>
    %84 = vector.shape_cast %83 : vector<1x16x1xf32> to vector<16x1xf32>
    %cst_56 = arith.constant dense<0xFF800000> : vector<16xf32>
    %85 = vector.multi_reduction <maximumf>, %80, %cst_56 [1] : vector<16x16xf32> to vector<16xf32>
    %86 = vector.shape_cast %85 : vector<16xf32> to vector<16x1xf32>
    %87 = arith.maximumf %82, %86 : vector<16x1xf32>
    %88 = arith.subf %82, %87 : vector<16x1xf32>
    %89 = math.exp %88 : vector<16x1xf32>
    %90 = vector.broadcast %87 : vector<16x1xf32> to vector<16x16xf32>
    %91 = arith.subf %80, %90 : vector<16x16xf32>
    %92 = math.exp %91 : vector<16x16xf32>
    %93 = arith.mulf %89, %84 : vector<16x1xf32>
    %cst_57 = arith.constant dense<0.000000e+00> : vector<16xf32>
    %94 = vector.multi_reduction <add>, %92, %cst_57 [1] : vector<16x16xf32> to vector<16xf32>
    %95 = vector.shape_cast %94 : vector<16xf32> to vector<16x1xf32>
    %96 = arith.addf %93, %95 : vector<16x1xf32>
    %c2_58 = arith.constant 2 : index
    %c0_59 = arith.constant 0 : index
    %c0_60 = arith.constant 0 : index
    %97 = vector.load %arg15[%c2_58, %c0_59, %c0_60] : memref<4x16x1xf32, #tpu.memory_space<vmem>>, vector<1x16x1xf32>
    %98 = vector.shape_cast %97 : vector<1x16x1xf32> to vector<16x1xf32>
    %99 = vector.shape_cast %96 : vector<16x1xf32> to vector<1x16x1xf32>
    tpu.vector_store %arg15[%c2_58, %c0_59, %c0_60], %99 {strides = array<i32>} : memref<4x16x1xf32, #tpu.memory_space<vmem>>, vector<1x16x1xf32>,
    %c2_61 = arith.constant 2 : index
    %c0_62 = arith.constant 0 : index
    %c0_63 = arith.constant 0 : index
    %100 = vector.load %arg14[%c2_61, %c0_62, %c0_63] : memref<4x16x1xf32, #tpu.memory_space<vmem>>, vector<1x16x1xf32>
    %101 = vector.shape_cast %100 : vector<1x16x1xf32> to vector<16x1xf32>
    %102 = vector.shape_cast %87 : vector<16x1xf32> to vector<1x16x1xf32>
    tpu.vector_store %arg14[%c2_61, %c0_62, %c0_63], %102 {strides = array<i32>} : memref<4x16x1xf32, #tpu.memory_space<vmem>>, vector<1x16x1xf32>,
    %c0_64 = arith.constant 0 : index
    %c256_65 = arith.constant 256 : index
    %103 = vector.load %arg13[%c0_64, %c256_65] : memref<16x512xf32, #tpu.memory_space<vmem>>, vector<16x128xf32>
    %104 = vector.broadcast %89 : vector<16x1xf32> to vector<16x128xf32>
    %105 = arith.mulf %103, %104 : vector<16x128xf32>
    %106 = arith.truncf %92 : vector<16x16xf32> to vector<16x16xbf16>
    %cst_66 = arith.constant dense<0.000000e+00> : vector<16x128xf32>
    %107 = tpu.matmul %106, %79, %cst_66 {dimension_numbers = #tpu.dot_dimension_numbers<[1], [0], [0], [1], [0, 0, 1, 1], [], []>} : vector<16x16xbf16>, vector<16x128xbf16>, vector<16x128xf32> -> vector<16x128xf32>
    %108 = arith.addf %105, %107 : vector<16x128xf32>
    %c0_67 = arith.constant 0 : index
    %c256_68 = arith.constant 256 : index
    %109 = vector.load %arg13[%c0_67, %c256_68] : memref<16x512xf32, #tpu.memory_space<vmem>>, vector<16x128xf32>
    tpu.vector_store %arg13[%c0_67, %c256_68], %108 {strides = array<i32>} : memref<16x512xf32, #tpu.memory_space<vmem>>, vector<16x128xf32>,
    %c0_69 = arith.constant 0 : index
    %c384 = arith.constant 384 : index
    %110 = vector.load %arg12[%c0_69, %c384] : memref<16x512xbf16, #tpu.memory_space<vmem>>, vector<16x128xbf16>
    %111 = vector.extract_strided_slice %10 {offsets = [0, 384], sizes = [16, 128], strides = [1, 1]} : vector<16x1024xbf16> to vector<16x128xbf16>
    %112 = vector.extract_strided_slice %10 {offsets = [0, 896], sizes = [16, 128], strides = [1, 1]} : vector<16x1024xbf16> to vector<16x128xbf16>
    "tpu.trace_start"() <{level = 10 : i32, message = "qd,kd->qk"}> : () -> ()
    %cst_70 = arith.constant dense<0.000000e+00> : vector<16x16xf32>
    %113 = tpu.matmul %110, %111, %cst_70 {dimension_numbers = #tpu.dot_dimension_numbers<[1], [1], [0], [0], [0, 0, 1, 0], [], []>} : vector<16x128xbf16>, vector<16x128xbf16>, vector<16x16xf32> -> vector<16x16xf32>
    "tpu.trace_stop"() : () -> ()
    %c3 = arith.constant 3 : index
    %c0_71 = arith.constant 0 : index
    %c0_72 = arith.constant 0 : index
    %114 = vector.load %arg14[%c3, %c0_71, %c0_72] : memref<4x16x1xf32, #tpu.memory_space<vmem>>, vector<1x16x1xf32>
    %115 = vector.shape_cast %114 : vector<1x16x1xf32> to vector<16x1xf32>
    %c3_73 = arith.constant 3 : index
    %c0_74 = arith.constant 0 : index
    %c0_75 = arith.constant 0 : index
    %116 = vector.load %arg15[%c3_73, %c0_74, %c0_75] : memref<4x16x1xf32, #tpu.memory_space<vmem>>, vector<1x16x1xf32>
    %117 = vector.shape_cast %116 : vector<1x16x1xf32> to vector<16x1xf32>
    %cst_76 = arith.constant dense<0xFF800000> : vector<16xf32>
    %118 = vector.multi_reduction <maximumf>, %113, %cst_76 [1] : vector<16x16xf32> to vector<16xf32>
    %119 = vector.shape_cast %118 : vector<16xf32> to vector<16x1xf32>
    %120 = arith.maximumf %115, %119 : vector<16x1xf32>
    %121 = arith.subf %115, %120 : vector<16x1xf32>
    %122 = math.exp %121 : vector<16x1xf32>
    %123 = vector.broadcast %120 : vector<16x1xf32> to vector<16x16xf32>
    %124 = arith.subf %113, %123 : vector<16x16xf32>
    %125 = math.exp %124 : vector<16x16xf32>
    %126 = arith.mulf %122, %117 : vector<16x1xf32>
    %cst_77 = arith.constant dense<0.000000e+00> : vector<16xf32>
    %127 = vector.multi_reduction <add>, %125, %cst_77 [1] : vector<16x16xf32> to vector<16xf32>
    %128 = vector.shape_cast %127 : vector<16xf32> to vector<16x1xf32>
    %129 = arith.addf %126, %128 : vector<16x1xf32>
    %c3_78 = arith.constant 3 : index
    %c0_79 = arith.constant 0 : index
    %c0_80 = arith.constant 0 : index
    %130 = vector.load %arg15[%c3_78, %c0_79, %c0_80] : memref<4x16x1xf32, #tpu.memory_space<vmem>>, vector<1x16x1xf32>
    %131 = vector.shape_cast %130 : vector<1x16x1xf32> to vector<16x1xf32>
    %132 = vector.shape_cast %129 : vector<16x1xf32> to vector<1x16x1xf32>
    tpu.vector_store %arg15[%c3_78, %c0_79, %c0_80], %132 {strides = array<i32>} : memref<4x16x1xf32, #tpu.memory_space<vmem>>, vector<1x16x1xf32>,
    %c3_81 = arith.constant 3 : index
    %c0_82 = arith.constant 0 : index
    %c0_83 = arith.constant 0 : index
    %133 = vector.load %arg14[%c3_81, %c0_82, %c0_83] : memref<4x16x1xf32, #tpu.memory_space<vmem>>, vector<1x16x1xf32>
    %134 = vector.shape_cast %133 : vector<1x16x1xf32> to vector<16x1xf32>
    %135 = vector.shape_cast %120 : vector<16x1xf32> to vector<1x16x1xf32>
    tpu.vector_store %arg14[%c3_81, %c0_82, %c0_83], %135 {strides = array<i32>} : memref<4x16x1xf32, #tpu.memory_space<vmem>>, vector<1x16x1xf32>,
    %c0_84 = arith.constant 0 : index
    %c384_85 = arith.constant 384 : index
    %136 = vector.load %arg13[%c0_84, %c384_85] : memref<16x512xf32, #tpu.memory_space<vmem>>, vector<16x128xf32>
    %137 = vector.broadcast %122 : vector<16x1xf32> to vector<16x128xf32>
    %138 = arith.mulf %136, %137 : vector<16x128xf32>
    %139 = arith.truncf %125 : vector<16x16xf32> to vector<16x16xbf16>
    %cst_86 = arith.constant dense<0.000000e+00> : vector<16x128xf32>
    %140 = tpu.matmul %139, %112, %cst_86 {dimension_numbers = #tpu.dot_dimension_numbers<[1], [0], [0], [1], [0, 0, 1, 1], [], []>} : vector<16x16xbf16>, vector<16x128xbf16>, vector<16x128xf32> -> vector<16x128xf32>
    %141 = arith.addf %138, %140 : vector<16x128xf32>
    %c0_87 = arith.constant 0 : index
    %c384_88 = arith.constant 384 : index
    %142 = vector.load %arg13[%c0_87, %c384_88] : memref<16x512xf32, #tpu.memory_space<vmem>>, vector<16x128xf32>
    tpu.vector_store %arg13[%c0_87, %c384_88], %141 {strides = array<i32>} : memref<16x512xf32, #tpu.memory_space<vmem>>, vector<16x128xf32>,
    %c1_i32 = arith.constant 1 : i32
    %143 = arith.cmpi eq, %arg2, %c1_i32 : i32
    %144 = arith.extui %143 : i1 to i32
    %c0_i32_89 = arith.constant 0 : i32
    %145 = arith.cmpi ne, %144, %c0_i32_89 : i32
    scf.if %145 {
      %c0_90 = arith.constant 0 : index
      %c0_91 = arith.constant 0 : index
      %c0_92 = arith.constant 0 : index
      %146 = vector.load %arg15[%c0_90, %c0_91, %c0_92] : memref<4x16x1xf32, #tpu.memory_space<vmem>>, vector<1x16x1xf32>
      %147 = vector.shape_cast %146 : vector<1x16x1xf32> to vector<16x1xf32>
      %148 = tpu.reciprocal %147 {approx = true} : vector<16x1xf32> -> vector<16x1xf32>
      %c0_93 = arith.constant 0 : index
      %c0_94 = arith.constant 0 : index
      %149 = vector.load %arg13[%c0_93, %c0_94] : memref<16x512xf32, #tpu.memory_space<vmem>>, vector<16x128xf32>
      %150 = vector.broadcast %148 : vector<16x1xf32> to vector<16x128xf32>
      %151 = arith.mulf %149, %150 : vector<16x128xf32>
      %152 = arith.truncf %151 : vector<16x128xf32> to vector<16x128xbf16>
      %c1_95 = arith.constant 1 : index
      %c0_96 = arith.constant 0 : index
      %c0_97 = arith.constant 0 : index
      %153 = vector.load %arg15[%c1_95, %c0_96, %c0_97] : memref<4x16x1xf32, #tpu.memory_space<vmem>>, vector<1x16x1xf32>
      %154 = vector.shape_cast %153 : vector<1x16x1xf32> to vector<16x1xf32>
      %155 = tpu.reciprocal %154 {approx = true} : vector<16x1xf32> -> vector<16x1xf32>
      %c0_98 = arith.constant 0 : index
      %c128_99 = arith.constant 128 : index
      %156 = vector.load %arg13[%c0_98, %c128_99] : memref<16x512xf32, #tpu.memory_space<vmem>>, vector<16x128xf32>
      %157 = vector.broadcast %155 : vector<16x1xf32> to vector<16x128xf32>
      %158 = arith.mulf %156, %157 : vector<16x128xf32>
      %159 = arith.truncf %158 : vector<16x128xf32> to vector<16x128xbf16>
      %c2_100 = arith.constant 2 : index
      %c0_101 = arith.constant 0 : index
      %c0_102 = arith.constant 0 : index
      %160 = vector.load %arg15[%c2_100, %c0_101, %c0_102] : memref<4x16x1xf32, #tpu.memory_space<vmem>>, vector<1x16x1xf32>
      %161 = vector.shape_cast %160 : vector<1x16x1xf32> to vector<16x1xf32>
      %162 = tpu.reciprocal %161 {approx = true} : vector<16x1xf32> -> vector<16x1xf32>
      %c0_103 = arith.constant 0 : index
      %c256_104 = arith.constant 256 : index
      %163 = vector.load %arg13[%c0_103, %c256_104] : memref<16x512xf32, #tpu.memory_space<vmem>>, vector<16x128xf32>
      %164 = vector.broadcast %162 : vector<16x1xf32> to vector<16x128xf32>
      %165 = arith.mulf %163, %164 : vector<16x128xf32>
      %166 = arith.truncf %165 : vector<16x128xf32> to vector<16x128xbf16>
      %c3_105 = arith.constant 3 : index
      %c0_106 = arith.constant 0 : index
      %c0_107 = arith.constant 0 : index
      %167 = vector.load %arg15[%c3_105, %c0_106, %c0_107] : memref<4x16x1xf32, #tpu.memory_space<vmem>>, vector<1x16x1xf32>
      %168 = vector.shape_cast %167 : vector<1x16x1xf32> to vector<16x1xf32>
      %169 = tpu.reciprocal %168 {approx = true} : vector<16x1xf32> -> vector<16x1xf32>
      %c0_108 = arith.constant 0 : index
      %c384_109 = arith.constant 384 : index
      %170 = vector.load %arg13[%c0_108, %c384_109] : memref<16x512xf32, #tpu.memory_space<vmem>>, vector<16x128xf32>
      %171 = vector.broadcast %169 : vector<16x1xf32> to vector<16x128xf32>
      %172 = arith.mulf %170, %171 : vector<16x128xf32>
      %173 = arith.truncf %172 : vector<16x128xf32> to vector<16x128xbf16>
      %174 = tpu.concatenate %152, %159, %166, %173 in 1 : vector<16x128xbf16>, vector<16x128xbf16>, vector<16x128xbf16>, vector<16x128xbf16> -> vector<16x512xbf16>
      %c0_110 = arith.constant 0 : index
      %c0_111 = arith.constant 0 : index
      %175 = vector.load %arg9[%c0_110, %c0_111] : memref<512x128xbf16, #tpu.memory_space<vmem>>, vector<512x128xbf16>
      %cst_112 = arith.constant dense<0.000000e+00> : vector<16x128xf32>
      %176 = tpu.matmul %174, %175, %cst_112 {dimension_numbers = #tpu.dot_dimension_numbers<[1], [0], [0], [1], [0, 0, 1, 1], [], []>} : vector<16x512xbf16>, vector<512x128xbf16>, vector<16x128xf32> -> vector<16x128xf32>
      %c0_113 = arith.constant 0 : index
      %c0_114 = arith.constant 0 : index
      %177 = vector.load %arg10[%c0_113, %c0_114] : memref<1x128xf32, #tpu.memory_space<vmem>>, vector<1x128xf32>
      %178 = vector.broadcast %177 : vector<1x128xf32> to vector<16x128xf32>
      %179 = arith.addf %176, %178 : vector<16x128xf32>
      %c0_115 = arith.constant 0 : index
      %c0_116 = arith.constant 0 : index
      %c0_117 = arith.constant 0 : index
      %180 = vector.load %arg11[%c0_115, %c0_116, %c0_117] : memref<1x16x128xf32, #tpu.memory_space<vmem>>, vector<1x16x128xf32>
      %181 = vector.shape_cast %180 : vector<1x16x128xf32> to vector<16x128xf32>
      %182 = vector.shape_cast %179 : vector<16x128xf32> to vector<1x16x128xf32>
      tpu.vector_store %arg11[%c0_115, %c0_116, %c0_117], %182 {strides = array<i32>} : memref<1x16x128xf32, #tpu.memory_space<vmem>>, vector<1x16x128xf32>,
    } else {
    }
    return
  }
  func.func @transform_0(%arg0: i32, %arg1: i32, %arg2: i32) -> (i32, i32, i32) {
    %c0_i32 = arith.constant 0 : i32
    %c0_i32_0 = arith.constant 0 : i32
    return %arg0, %arg1, %c0_i32 : i32, i32, i32
  }
  func.func @transform_1(%arg0: i32, %arg1: i32, %arg2: i32) -> (i32, i32, i32) {
    %c0_i32 = arith.constant 0 : i32
    %c0_i32_0 = arith.constant 0 : i32
    return %arg0, %arg2, %c0_i32 : i32, i32, i32
  }
  func.func @transform_2(%arg0: i32, %arg1: i32, %arg2: i32) -> (i32, i32) {
    %c0_i32 = arith.constant 0 : i32
    %c0_i32_0 = arith.constant 0 : i32
    %c0_i32_1 = arith.constant 0 : i32
    return %c0_i32, %c0_i32_0 : i32, i32
  }
  func.func @transform_3(%arg0: i32, %arg1: i32, %arg2: i32) -> (i32, i32) {
    %c0_i32 = arith.constant 0 : i32
    %c0_i32_0 = arith.constant 0 : i32
    %c0_i32_1 = arith.constant 0 : i32
    return %c0_i32, %c0_i32_0 : i32, i32
  }
  func.func @transform_4(%arg0: i32, %arg1: i32, %arg2: i32) -> (i32, i32) {
    %c0_i32 = arith.constant 0 : i32
    %c0_i32_0 = arith.constant 0 : i32
    %c0_i32_1 = arith.constant 0 : i32
    return %c0_i32, %c0_i32_0 : i32, i32
  }
  func.func @transform_5(%arg0: i32, %arg1: i32, %arg2: i32) -> (i32, i32) {
    %c0_i32 = arith.constant 0 : i32
    %c0_i32_0 = arith.constant 0 : i32
    %c0_i32_1 = arith.constant 0 : i32
    return %c0_i32, %c0_i32_0 : i32, i32
  }
  func.func @transform_6(%arg0: i32, %arg1: i32, %arg2: i32) -> (i32, i32) {
    %c0_i32 = arith.constant 0 : i32
    %c0_i32_0 = arith.constant 0 : i32
    %c0_i32_1 = arith.constant 0 : i32
    return %c0_i32, %c0_i32_0 : i32, i32
  }
  func.func @transform_7(%arg0: i32, %arg1: i32, %arg2: i32) -> (i32, i32) {
    %c0_i32 = arith.constant 0 : i32
    %c0_i32_0 = arith.constant 0 : i32
    %c0_i32_1 = arith.constant 0 : i32
    return %c0_i32, %c0_i32_0 : i32, i32
  }
  func.func @transform_8(%arg0: i32, %arg1: i32, %arg2: i32) -> (i32, i32, i32) {
    %c0_i32 = arith.constant 0 : i32
    %c0_i32_0 = arith.constant 0 : i32
    return %arg0, %arg1, %c0_i32 : i32, i32, i32
  }
}

</mosaic_0001>

<llo_original>
// kernel: tpu_custom_call.1
$region0: #{tpu_custom_call.1}
  #allocation0 [shape = 'u32[]', space=smem, size = 0x4, offset = 0x4, fixed_abs, tag = 'smem constant byte address 0x4 - core index']
  #allocation1 [shape = 'u32[144,128]{1,0:T(1,128)}', space=vmem, size = 0x12000, scoped, tag = 'internal scratch']
  #allocation2 [shape = 'bf16[16,512]{1,0:T(16,128)(2,1)}', space=vmem, size = 0x4000, scoped, tag = 'scratch operand']
  #allocation3 [shape = 'f32[16,512]{1,0:T(8,128)}', space=vmem, size = 0x8000, scoped, tag = 'scratch operand']
  #allocation4 [shape = 'f32[4,16,1]{2,1,0:T(8,128)}', space=vmem, size = 0x8000, scoped, tag = 'scratch operand']
  #allocation5 [shape = 'f32[4,16,1]{2,1,0:T(8,128)}', space=vmem, size = 0x8000, scoped, tag = 'scratch operand']
  %s0 = inlined_call_operand.hbm [shape: bf16[2,32,32], index: 0, kind: input, shape index: {}]
  %s1 = inlined_call_operand.hbm [shape: bf16[2,32,32], index: 1, kind: input, shape index: {}]
  %s2 = inlined_call_operand.hbm [shape: bf16[32,512], index: 2, kind: input, shape index: {}]
  %s3 = inlined_call_operand.vmem [shape: f32[1,512], index: 3, kind: input, shape index: {}]
  %s4 = inlined_call_operand.hbm [shape: bf16[32,1024], index: 4, kind: input, shape index: {}]
  %s5 = inlined_call_operand.vmem [shape: f32[1,1024], index: 5, kind: input, shape index: {}]
  %s6 = inlined_call_operand.hbm [shape: bf16[512,128], index: 6, kind: input, shape index: {}]
  %s7 = inlined_call_operand.vmem [shape: f32[1,128], index: 7, kind: input, shape index: {}]
  %s8 = inlined_call_operand.hbm [shape: f32[2,32,128], index: 8, kind: output, shape index: {}]
  %s9 = sld [smem:[#allocation0]]
  $region93: #{tpu_custom_call.1} parent=0
    _
  %s11 = ssub.s32 1, %s9
  %s12 = scalar_select 0, %s11, %s9
  $region1: #{tpu_custom_call.1} parent=0
    #allocation6 [shape = 'u8[8192]{0}', space=vmem, size = 0x2000, scoped, tag = 'input window, operand 0']
    #allocation7 [shape = 's32[2]{0}', space=sflag, size = 0x8, scoped, tag = 'scoped memory for tpu_custom_call.1']
    #allocation8 [shape = 's32[2]{0}', space=sflag, size = 0x8, scoped, tag = 'scoped memory for tpu_custom_call.1']
    #allocation9 [shape = 'u8[8192]{0}', space=vmem, size = 0x2000, scoped, tag = 'input window, operand 1']
    #allocation10 [shape = 's32[2]{0}', space=sflag, size = 0x8, scoped, tag = 'scoped memory for tpu_custom_call.1']
    #allocation11 [shape = 'u8[32768]{0}', space=vmem, size = 0x8000, scoped, tag = 'input window, operand 2, single buffered']
    #allocation12 [shape = 'u8[65536]{0}', space=vmem, size = 0x10000, scoped, tag = 'input window, operand 4, single buffered']
    #allocation13 [shape = 's32[1]{0}', space=sflag, size = 0x4, scoped, tag = 'scoped memory for tpu_custom_call.1']
    #allocation14 [shape = 'u8[131072]{0}', space=vmem, size = 0x20000, scoped, tag = 'input window, operand 6, single buffered']
    #allocation15 [shape = 'u8[16384]{0}', space=vmem, size = 0x4000, scoped, tag = 'output window, operand 0']
    %13 = vsyncpa [#allocation7], 0
    %s14 = scalar_lea.sflag [#allocation7], 1
    %15 = vsyncpa %s14, 0
    %16 = vsyncpa [#allocation10], 0
    %s17 = scalar_lea.sflag [#allocation10], 1
    %18 = vsyncpa %s17, 0
    %19 = vsyncpa [#allocation13], 0
    %20 = vsyncpa [#allocation8], 0
    %s21 = scalar_lea.sflag [#allocation8], 1
    %22 = vsyncpa %s21, 0
    loop: start=0, step=1, limit=10
    $region2: #{tpu_custom_call.1} parent=1 // loop_pre_header
      _
    $region3: #{tpu_custom_call.1} parent=1 // loop_header
      %s24 = sphi 0, %s28
      %p25 = scmp.ge.s32.totalorder %s24, 10
      %s31 = sphi 0, %s50
      %s32 = sphi 0, %s46
      %s33 = sphi 0, %s42
      %s34 = sphi 0, %s31
      %s35 = sphi 0, %s32
      %s36 = sphi 0, %s33
      %s37 = sphi 0, %s34
      %s38 = sphi 0, %s35
      %s39 = sphi 0, %s36
      %s55 = sphi 0, %s57
      %s58 = sphi 0, %s55
      %s59 = sphi 0, %s58
      %s75 = sphi 0, %s59
      %s83 = sphi 0, %s85
      %s86 = sphi 0, %s83
      %s87 = sphi 0, %s86
      %s103 = sphi 0, %s87
      %s107 = sphi 0, %s107
      %s109 = sphi 0, %s107
      %s110 = sphi 0, %s109
      %s124 = sphi 0, %s110
      %s128 = sphi 0, %s128
      %s130 = sphi 0, %s128
      %s131 = sphi 0, %s130
      %s145 = sphi 0, %s131
      %s149 = sphi 0, %s149
      %s151 = sphi 0, %s149
      %s152 = sphi 0, %s151
      %s166 = sphi 0, %s152
      %s170 = sphi 0, %s170
      %s172 = sphi 0, %s170
      %s173 = sphi 0, %s172
      %s187 = sphi 0, %s173
      %s191 = sphi 0, %s191
      %s193 = sphi 0, %s191
      %s194 = sphi 0, %s193
      %s208 = sphi 0, %s194
      %s212 = sphi 0, %s212
      %s214 = sphi 0, %s212
      %s215 = sphi 0, %s214
      %s229 = sphi 0, %s215
      %s237 = sphi 0, %s239
      %s240 = sphi 0, %s237
      %s241 = sphi 0, %s240
      %s257 = sphi 0, %s241
    $region4: #{tpu_custom_call.1} parent=1 // loop_header_branch
      %27 = sbr.rel (%p25) target = $region8
    $region5: #{tpu_custom_call.1} parent=1 // loop_body
      %s29 = ssub.s32 %s24, 1
      %s30 = ssub.s32 %s24, 2
      %s40 = sadd.s32 1, %s33
      %p41 = scmp.ge.s32.totalorder %s40, 2
      %s42 = scalar_select %p41, 0, %s40
      %s43 = sadd.s32 1, %s32
      %s44 = scalar_select %p41, %s43, %s32
      %p45 = scmp.ge.s32.totalorder %s44, 2
      %s46 = scalar_select %p45, 0, %s44
      %s47 = sadd.s32 1, %s31
      %s48 = scalar_select %p45, %s47, %s31
      %p49 = scmp.ge.s32.totalorder %s48, 2
      %s50 = scalar_select %p49, 0, %s48
      %s51 = ssub.s32 %s31, %s50
      %s52 = ssub.s32 %s32, %s46
      %s53 = sor.u32 %s51, %s52
      %p54 = scmp.eq.s32.totalorder %s53, 0
      %s56 = sadd.s32 %s55, 1
      %s57 = scalar_select %p54, %s55, %s56
      %p60 = pneg %p54
      %p61 = scmp.eq.s32.totalorder %s24, 7
      %p62 = por %p60, %p61
      %p63 = scmp.ne.s32.totalorder %s55, %s58
      %p64 = scmp.eq.s32.totalorder %s24, 0
      %p65 = por %p63, %p64
      %p66 = scmp.ne.s32.totalorder %s55, %s58
      %p67 = scmp.eq.s32.totalorder %s29, 7
      %p68 = por %p66, %p67
      %p69 = scmp.ne.s32.totalorder %s58, %s59
      %p70 = scmp.eq.s32.totalorder %s29, 0
      %p71 = por %p69, %p70
      %p72 = scmp.ne.s32.totalorder %s58, %s59
      %p73 = scmp.eq.s32.totalorder %s30, 7
      %p74 = por %p72, %p73
      %p76 = scmp.ne.s32.totalorder %s59, %s75
      %p77 = scmp.eq.s32.totalorder %s30, 0
      %p78 = por %p76, %p77
      %s79 = ssub.s32 %s31, %s50
      %s80 = ssub.s32 %s33, %s42
      %s81 = sor.u32 %s79, %s80
      %p82 = scmp.eq.s32.totalorder %s81, 0
      %s84 = sadd.s32 %s83, 1
      %s85 = scalar_select %p82, %s83, %s84
      %p88 = pneg %p82
      %p89 = scmp.eq.s32.totalorder %s24, 7
      %p90 = por %p88, %p89
      %p91 = scmp.ne.s32.totalorder %s83, %s86
      %p92 = scmp.eq.s32.totalorder %s24, 0
      %p93 = por %p91, %p92
      %p94 = scmp.ne.s32.totalorder %s83, %s86
      %p95 = scmp.eq.s32.totalorder %s29, 7
      %p96 = por %p94, %p95
      %p97 = scmp.ne.s32.totalorder %s86, %s87
      %p98 = scmp.eq.s32.totalorder %s29, 0
      %p99 = por %p97, %p98
      %p100 = scmp.ne.s32.totalorder %s86, %s87
      %p101 = scmp.eq.s32.totalorder %s30, 7
      %p102 = por %p100, %p101
      %p104 = scmp.ne.s32.totalorder %s87, %s103
      %p105 = scmp.eq.s32.totalorder %s30, 0
      %p106 = por %p104, %p105
      %s108 = sadd.s32 %s107, 1
      %p111 = scmp.eq.s32.totalorder %s24, 7
      %p112 = scmp.ne.s32.totalorder %s107, %s109
      %p113 = scmp.eq.s32.totalorder %s24, 0
      %p114 = por %p112, %p113
      %p115 = scmp.ne.s32.totalorder %s107, %s109
      %p116 = scmp.eq.s32.totalorder %s29, 7
      %p117 = por %p115, %p116
      %p118 = scmp.ne.s32.totalorder %s109, %s110
      %p119 = scmp.eq.s32.totalorder %s29, 0
      %p120 = por %p118, %p119
      %p121 = scmp.ne.s32.totalorder %s109, %s110
      %p122 = scmp.eq.s32.totalorder %s30, 7
      %p123 = por %p121, %p122
      %p125 = scmp.ne.s32.totalorder %s110, %s124
      %p126 = scmp.eq.s32.totalorder %s30, 0
      %p127 = por %p125, %p126
      %s129 = sadd.s32 %s128, 1
      %p132 = scmp.eq.s32.totalorder %s24, 7
      %p133 = scmp.ne.s32.totalorder %s128, %s130
      %p134 = scmp.eq.s32.totalorder %s24, 0
      %p135 = por %p133, %p134
      %p136 = scmp.ne.s32.totalorder %s128, %s130
      %p137 = scmp.eq.s32.totalorder %s29, 7
      %p138 = por %p136, %p137
      %p139 = scmp.ne.s32.totalorder %s130, %s131
      %p140 = scmp.eq.s32.totalorder %s29, 0
      %p141 = por %p139, %p140
      %p142 = scmp.ne.s32.totalorder %s130, %s131
      %p143 = scmp.eq.s32.totalorder %s30, 7
      %p144 = por %p142, %p143
      %p146 = scmp.ne.s32.totalorder %s131, %s145
      %p147 = scmp.eq.s32.totalorder %s30, 0
      %p148 = por %p146, %p147
      %s150 = sadd.s32 %s149, 1
      %p153 = scmp.eq.s32.totalorder %s24, 7
      %p154 = scmp.ne.s32.totalorder %s149, %s151
      %p155 = scmp.eq.s32.totalorder %s24, 0
      %p156 = por %p154, %p155
      %p157 = scmp.ne.s32.totalorder %s149, %s151
      %p158 = scmp.eq.s32.totalorder %s29, 7
      %p159 = por %p157, %p158
      %p160 = scmp.ne.s32.totalorder %s151, %s152
      %p161 = scmp.eq.s32.totalorder %s29, 0
      %p162 = por %p160, %p161
      %p163 = scmp.ne.s32.totalorder %s151, %s152
      %p164 = scmp.eq.s32.totalorder %s30, 7
      %p165 = por %p163, %p164
      %p167 = scmp.ne.s32.totalorder %s152, %s166
      %p168 = scmp.eq.s32.totalorder %s30, 0
      %p169 = por %p167, %p168
      %s171 = sadd.s32 %s170, 1
      %p174 = scmp.eq.s32.totalorder %s24, 7
      %p175 = scmp.ne.s32.totalorder %s170, %s172
      %p176 = scmp.eq.s32.totalorder %s24, 0
      %p177 = por %p175, %p176
      %p178 = scmp.ne.s32.totalorder %s170, %s172
      %p179 = scmp.eq.s32.totalorder %s29, 7
      %p180 = por %p178, %p179
      %p181 = scmp.ne.s32.totalorder %s172, %s173
      %p182 = scmp.eq.s32.totalorder %s29, 0
      %p183 = por %p181, %p182
      %p184 = scmp.ne.s32.totalorder %s172, %s173
      %p185 = scmp.eq.s32.totalorder %s30, 7
      %p186 = por %p184, %p185
      %p188 = scmp.ne.s32.totalorder %s173, %s187
      %p189 = scmp.eq.s32.totalorder %s30, 0
      %p190 = por %p188, %p189
      %s192 = sadd.s32 %s191, 1
      %p195 = scmp.eq.s32.totalorder %s24, 7
      %p196 = scmp.ne.s32.totalorder %s191, %s193
      %p197 = scmp.eq.s32.totalorder %s24, 0
      %p198 = por %p196, %p197
      %p199 = scmp.ne.s32.totalorder %s191, %s193
      %p200 = scmp.eq.s32.totalorder %s29, 7
      %p201 = por %p199, %p200
      %p202 = scmp.ne.s32.totalorder %s193, %s194
      %p203 = scmp.eq.s32.totalorder %s29, 0
      %p204 = por %p202, %p203
      %p205 = scmp.ne.s32.totalorder %s193, %s194
      %p206 = scmp.eq.s32.totalorder %s30, 7
      %p207 = por %p205, %p206
      %p209 = scmp.ne.s32.totalorder %s194, %s208
      %p210 = scmp.eq.s32.totalorder %s30, 0
      %p211 = por %p209, %p210
      %s213 = sadd.s32 %s212, 1
      %p216 = scmp.eq.s32.totalorder %s24, 7
      %p217 = scmp.ne.s32.totalorder %s212, %s214
      %p218 = scmp.eq.s32.totalorder %s24, 0
      %p219 = por %p217, %p218
      %p220 = scmp.ne.s32.totalorder %s212, %s214
      %p221 = scmp.eq.s32.totalorder %s29, 7
      %p222 = por %p220, %p221
      %p223 = scmp.ne.s32.totalorder %s214, %s215
      %p224 = scmp.eq.s32.totalorder %s29, 0
      %p225 = por %p223, %p224
      %p226 = scmp.ne.s32.totalorder %s214, %s215
      %p227 = scmp.eq.s32.totalorder %s30, 7
      %p228 = por %p226, %p227
      %p230 = scmp.ne.s32.totalorder %s215, %s229
      %p231 = scmp.eq.s32.totalorder %s30, 0
      %p232 = por %p230, %p231
      %s233 = ssub.s32 %s31, %s50
      %s234 = ssub.s32 %s32, %s46
      %s235 = sor.u32 %s233, %s234
      %p236 = scmp.eq.s32.totalorder %s235, 0
      %s238 = sadd.s32 %s237, 1
      %s239 = scalar_select %p236, %s237, %s238
      %p242 = pneg %p236
      %p243 = scmp.eq.s32.totalorder %s24, 7
      %p244 = por %p242, %p243
      %p245 = scmp.ne.s32.totalorder %s237, %s240
      %p246 = scmp.eq.s32.totalorder %s24, 0
      %p247 = por %p245, %p246
      %p248 = scmp.ne.s32.totalorder %s237, %s240
      %p249 = scmp.eq.s32.totalorder %s29, 7
      %p250 = por %p248, %p249
      %p251 = scmp.ne.s32.totalorder %s240, %s241
      %p252 = scmp.eq.s32.totalorder %s29, 0
      %p253 = por %p251, %p252
      %p254 = scmp.ne.s32.totalorder %s240, %s241
      %p255 = scmp.eq.s32.totalorder %s30, 7
      %p256 = por %p254, %p255
      %p258 = scmp.ne.s32.totalorder %s241, %s257
      %p259 = scmp.eq.s32.totalorder %s30, 0
      %p260 = por %p258, %p259
      %p261 = scmp.le.s32.totalorder 1, %s24
      %p262 = scmp.lt.s32.totalorder %s24, 9
      %p263 = pnand %p261, %p262
      %p264 = pneg %p263
      // Predicated region
      $region9: #{tpu_custom_call.1} parent=5 // pred_check
        _
      $region10: #{tpu_custom_call.1} parent=5 // pred_check_branch
        %266 = sbr.rel (%p263) target = $region12
      $region11: #{tpu_custom_call.1} parent=5 // pred_region
        %s267 = ssub.s32 %s24, 1
        // Predicated region
        $region13: #{tpu_custom_call.1} parent=11 // pred_check
          %p268 = pneg %p120
        $region14: #{tpu_custom_call.1} parent=11 // pred_check_branch
          %270 = sbr.rel (%p268) target = $region16
        $region15: #{tpu_custom_call.1} parent=11 // pred_region
          %s272 = ssub.s32 1024, 1024
          %273 = vsyncadd [#allocation10], %s272
          %s274 = sshll.u32 [#allocation11], 4
          %s275 = int_to_ptr.vmem [resolvable:$true] %s274
          %280 = dma.hbm_to_vmem [thread:$0]  %s2, 1024, %s275, [#allocation10], 256, 256, 16
        $region16: #{tpu_custom_call.1} parent=11 // pred_fallthru
          _
        // Predicated region
        $region17: #{tpu_custom_call.1} parent=11 // pred_check
          %p281 = pneg %p141
        $region18: #{tpu_custom_call.1} parent=11 // pred_check_branch
          %283 = sbr.rel (%p281) target = $region20
        $region19: #{tpu_custom_call.1} parent=11 // pred_region
          _
        $region20: #{tpu_custom_call.1} parent=11 // pred_fallthru
          _
        // Predicated region
        $region21: #{tpu_custom_call.1} parent=11 // pred_check
          %p284 = pneg %p162
        $region22: #{tpu_custom_call.1} parent=11 // pred_check_branch
          %286 = sbr.rel (%p284) target = $region24
        $region23: #{tpu_custom_call.1} parent=11 // pred_region
          %s288 = ssub.s32 2048, 2048
          %289 = vsyncadd [#allocation13], %s288
          %s290 = sshll.u32 [#allocation12], 4
          %s291 = int_to_ptr.vmem [resolvable:$true] %s290
          %296 = dma.hbm_to_vmem [thread:$0]  %s4, 2048, %s291, [#allocation13], 512, 512, 32
        $region24: #{tpu_custom_call.1} parent=11 // pred_fallthru
          _
        // Predicated region
        $region25: #{tpu_custom_call.1} parent=11 // pred_check
          %p297 = pneg %p183
        $region26: #{tpu_custom_call.1} parent=11 // pred_check_branch
          %299 = sbr.rel (%p297) target = $region28
        $region27: #{tpu_custom_call.1} parent=11 // pred_region
          _
        $region28: #{tpu_custom_call.1} parent=11 // pred_fallthru
          _
        // Predicated region
        $region29: #{tpu_custom_call.1} parent=11 // pred_check
          %p300 = pneg %p204
        $region30: #{tpu_custom_call.1} parent=11 // pred_check_branch
          %302 = sbr.rel (%p300) target = $region32
        $region31: #{tpu_custom_call.1} parent=11 // pred_region
          %s304 = ssub.s32 4096, 4096
          %305 = vsyncadd [#allocation13], %s304
          %s306 = sshll.u32 [#allocation14], 4
          %s307 = int_to_ptr.vmem [resolvable:$true] %s306
          %312 = dma.hbm_to_vmem [thread:$0]  %s6, 4096, %s307, [#allocation13], 64, 64, 4
        $region32: #{tpu_custom_call.1} parent=11 // pred_fallthru
          _
        // Predicated region
        $region33: #{tpu_custom_call.1} parent=11 // pred_check
          %p313 = pneg %p225
        $region34: #{tpu_custom_call.1} parent=11 // pred_check_branch
          %315 = sbr.rel (%p313) target = $region36
        $region35: #{tpu_custom_call.1} parent=11 // pred_region
          _
        $region36: #{tpu_custom_call.1} parent=11 // pred_fallthru
          _
      $region12: #{tpu_custom_call.1} parent=5 // pred_fallthru
        _
      %p316 = scmp.lt.s32.totalorder %s24, 8
      // Predicated region
      $region37: #{tpu_custom_call.1} parent=5 // pred_check
        %p317 = pneg %p316
      $region38: #{tpu_custom_call.1} parent=5 // pred_check_branch
        %319 = sbr.rel (%p317) target = $region40
      $region39: #{tpu_custom_call.1} parent=5 // pred_region
        // Predicated region
        $region41: #{tpu_custom_call.1} parent=39 // pred_check
          %p320 = pneg %p65
        $region42: #{tpu_custom_call.1} parent=39 // pred_check_branch
          %322 = sbr.rel (%p320) target = $region44
        $region43: #{tpu_custom_call.1} parent=39 // pred_region
          %s323 = sand.u32 %s55, 1
          %s324 = scalar_lea.sflag [#allocation7], %s323
          %s325 = sand.u32 %s55, 1
          %s326 = smul.addr %s325, 8
          %s327 = scalar_lea.vmem [#allocation6], %s326
          %s328 = smul.u32 2, %s32
          %s330 = ssub.s32 128, 128
          %331 = vsyncadd %s324, %s330
          %s332 = smul.addr %s31, 4
          %s333 = sadd.s32 %s328, %s332
          %s334 = smul.addr %s333, 64
          %s335 = scalar_lea.hbm %s0, %s334
          %s336 = sshll.u32 %s327, 4
          %s337 = int_to_ptr.vmem [resolvable:$true] %s336
          %342 = dma.hbm_to_vmem [thread:$0]  %s335, 128, %s337, %s324, 64, 64, 4
        $region44: #{tpu_custom_call.1} parent=39 // pred_fallthru
          _
        // Predicated region
        $region45: #{tpu_custom_call.1} parent=39 // pred_check
          %p343 = pneg %p93
        $region46: #{tpu_custom_call.1} parent=39 // pred_check_branch
          %345 = sbr.rel (%p343) target = $region48
        $region47: #{tpu_custom_call.1} parent=39 // pred_region
          %s346 = sand.u32 %s24, 1
          %s347 = scalar_lea.sflag [#allocation10], %s346
          %s348 = sand.u32 %s83, 1
          %s349 = smul.addr %s348, 8
          %s350 = scalar_lea.vmem [#allocation9], %s349
          %s351 = smul.u32 2, %s33
          %s353 = ssub.s32 128, 128
          %354 = vsyncadd %s347, %s353
          %s355 = smul.addr %s31, 4
          %s356 = sadd.s32 %s351, %s355
          %s357 = smul.addr %s356, 64
          %s358 = scalar_lea.hbm %s1, %s357
          %s359 = sshll.u32 %s350, 4
          %s360 = int_to_ptr.vmem [resolvable:$true] %s359
          %365 = dma.hbm_to_vmem [thread:$0]  %s358, 128, %s360, %s347, 64, 64, 4
        $region48: #{tpu_custom_call.1} parent=39 // pred_fallthru
          _
      $region40: #{tpu_custom_call.1} parent=5 // pred_fallthru
        _
      %p366 = scmp.le.s32.totalorder 1, %s24
      %p367 = scmp.lt.s32.totalorder %s24, 9
      %p368 = pnand %p366, %p367
      %p369 = pneg %p368
      // Predicated region
      $region49: #{tpu_custom_call.1} parent=5 // pred_check
        _
      $region50: #{tpu_custom_call.1} parent=5 // pred_check_branch
        %371 = sbr.rel (%p368) target = $region52
      $region51: #{tpu_custom_call.1} parent=5 // pred_region
        %s372 = ssub.s32 %s24, 1
        %s373 = sand.u32 %s58, 1
        %s374 = scalar_lea.sflag [#allocation7], %s373
        %s375 = sand.u32 %s58, 1
        %s376 = smul.addr %s375, 8
        %s377 = scalar_lea.vmem [#allocation6], %s376
        // Predicated region
        $region53: #{tpu_custom_call.1} parent=51 // pred_check
          %p378 = pneg %p71
        $region54: #{tpu_custom_call.1} parent=51 // pred_check_branch
          %380 = sbr.rel (%p378) target = $region56
        $region55: #{tpu_custom_call.1} parent=51 // pred_region
          %381 = dma.done %s374, 128
        $region56: #{tpu_custom_call.1} parent=51 // pred_fallthru
          _
        %s382 = sand.u32 %s29, 1
        %s383 = scalar_lea.sflag [#allocation10], %s382
        %s384 = sand.u32 %s86, 1
        %s385 = smul.addr %s384, 8
        %s386 = scalar_lea.vmem [#allocation9], %s385
        // Predicated region
        $region57: #{tpu_custom_call.1} parent=51 // pred_check
          %p387 = pneg %p99
        $region58: #{tpu_custom_call.1} parent=51 // pred_check_branch
          %389 = sbr.rel (%p387) target = $region60
        $region59: #{tpu_custom_call.1} parent=51 // pred_region
          %390 = dma.done %s383, 128
        $region60: #{tpu_custom_call.1} parent=51 // pred_fallthru
          _
        // Predicated region
        $region61: #{tpu_custom_call.1} parent=51 // pred_check
          %p391 = pneg %p120
        $region62: #{tpu_custom_call.1} parent=51 // pred_check_branch
          %393 = sbr.rel (%p391) target = $region64
        $region63: #{tpu_custom_call.1} parent=51 // pred_region
          %394 = dma.done [#allocation10], 1024
        $region64: #{tpu_custom_call.1} parent=51 // pred_fallthru
          _
        // Predicated region
        $region65: #{tpu_custom_call.1} parent=51 // pred_check
          %p395 = pneg %p162
        $region66: #{tpu_custom_call.1} parent=51 // pred_check_branch
          %397 = sbr.rel (%p395) target = $region68
        $region67: #{tpu_custom_call.1} parent=51 // pred_region
          %398 = dma.done [#allocation13], 2048
        $region68: #{tpu_custom_call.1} parent=51 // pred_fallthru
          _
        // Predicated region
        $region69: #{tpu_custom_call.1} parent=51 // pred_check
          %p399 = pneg %p204
        $region70: #{tpu_custom_call.1} parent=51 // pred_check_branch
          %401 = sbr.rel (%p399) target = $region72
        $region71: #{tpu_custom_call.1} parent=51 // pred_region
          %402 = dma.done [#allocation13], 4096
        $region72: #{tpu_custom_call.1} parent=51 // pred_fallthru
          _
        %s403 = sand.u32 %s58, 1
        %s404 = scalar_lea.sflag [#allocation7], %s403
        %s405 = sand.u32 %s58, 1
        %s406 = smul.addr %s405, 8
        %s407 = scalar_lea.vmem [#allocation6], %s406
        %p408 = pneg %p71
        %p409 = pneg %p68
        %s410 = sand.u32 %s29, 1
        %s411 = scalar_lea.sflag [#allocation10], %s410
        %s412 = sand.u32 %s86, 1
        %s413 = smul.addr %s412, 8
        %s414 = scalar_lea.vmem [#allocation9], %s413
        %p415 = pneg %p99
        %p416 = pneg %p96
        %p417 = pneg %p120
        %p418 = pneg %p117
        %p419 = pneg %p141
        %p420 = pneg %p138
        %p421 = pneg %p162
        %p422 = pneg %p159
        %p423 = pneg %p183
        %p424 = pneg %p180
        %p425 = pneg %p204
        %p426 = pneg %p201
        %p427 = pneg %p225
        %p428 = pneg %p222
        %p429 = pneg %p253
        %p430 = pneg %p250
        %s431 = sand.u32 %s240, 1
        %s432 = scalar_lea.sflag [#allocation8], %s431
        %s433 = sand.u32 %s240, 1
        %s434 = smul.addr %s433, 16
        %s435 = scalar_lea.vmem [#allocation15], %s434
        %s436 = smul.u32 2, %s35
        %s437 = smul.u32 2, %s36
        %s438 = smul.u32 2, %s35
        %p440 = scmp.eq.s32.totalorder %s36, 0
        // Predicated region
        $region73: #{tpu_custom_call.1} parent=51 // pred_check
          %p441 = pneg %p440
        $region74: #{tpu_custom_call.1} parent=51 // pred_check_branch
          %443 = sbr.rel (%p441) target = $region76
        $region75: #{tpu_custom_call.1} parent=51 // pred_region
          %v444 = vld [vmem:[%s377] sm:$0xf]
          %v445 = vld [vmem:[%s377 + $0x4] sm:$0xf]
          %v446 = vld [vmem:[#allocation11] sm:$0xff]
          %v447 = vld [vmem:[#allocation11 + $0x8] sm:$0xff]
          %v448 = vld [vmem:[#allocation11 + $0x10] sm:$0xff]
          %v449 = vld [vmem:[#allocation11 + $0x18] sm:$0xff]
          %v450 = vld [vmem:[#allocation11 + $0x20] sm:$0xff]
          %v451 = vld [vmem:[#allocation11 + $0x28] sm:$0xff]
          %v452 = vld [vmem:[#allocation11 + $0x30] sm:$0xff]
          %v453 = vld [vmem:[#allocation11 + $0x38] sm:$0xff]
          %v454 = vld [vmem:[%s3] sm:$0xf]
          %v456 = vlaneseq
          %v457 = vshrl.u32 %v456, 7
          %v458 = vsub.s32 0, %v457
          %v459 = vrot.slane %v454, %v458
          %v460 = vlaneseq
          %v461 = vshrl.u32 %v460, 7
          %v462 = vsub.s32 1, %v461
          %v463 = vrot.slane %v454, %v462
          %v464 = vlaneseq
          %v465 = vshrl.u32 %v464, 7
          %v466 = vsub.s32 2, %v465
          %v467 = vrot.slane %v454, %v466
          %v468 = vlaneseq
          %v469 = vshrl.u32 %v468, 7
          %v470 = vsub.s32 3, %v469
          %v471 = vrot.slane %v454, %v470
          %v478 = vunpack.c.l.b16 %v444
          %v479 = vunpack.c.l.b16 %v445
          %v480 = vpack.c.b16 %v479, %v478
          %v489 = vunpack.c.l.b16 %v446
          %v490 = vunpack.c.h.b16 %v446
          %v491 = vunpack.c.l.b16 %v447
          %v492 = vunpack.c.h.b16 %v447
          %v493 = vunpack.c.l.b16 %v448
          %v494 = vunpack.c.h.b16 %v448
          %v495 = vunpack.c.l.b16 %v449
          %v496 = vunpack.c.h.b16 %v449
          %v497 = vunpack.c.l.b16 %v450
          %v498 = vunpack.c.h.b16 %v450
          %v499 = vunpack.c.l.b16 %v451
          %v500 = vunpack.c.h.b16 %v451
          %v501 = vunpack.c.l.b16 %v452
          %v502 = vunpack.c.h.b16 %v452
          %v503 = vunpack.c.l.b16 %v453
          %v504 = vunpack.c.h.b16 %v453
          %v505 = vpack.c.b16 %v493, %v489
          %v506 = vpack.c.b16 %v494, %v490
          %v507 = vpack.c.b16 %v495, %v491
          %v508 = vpack.c.b16 %v496, %v492
          %v509 = vpack.c.b16 %v501, %v497
          %v510 = vpack.c.b16 %v502, %v498
          %v511 = vpack.c.b16 %v503, %v499
          %v512 = vpack.c.b16 %v504, %v500
          %vm521 = vcmask 261120
          %v523 = vsel %vm521, %v480, 0
          %525 = vmatprep.subr.bf16.mxu0 %v506
          %526 = vmatpush1.bf16.msra.mxu0 %v505
          %527 = vmatprep.subr.bf16.mxu0 %v510
          %528 = vmatpush1.bf16.msra.mxu0 %v509
          %529 = vmatprep.subr.bf16.mxu0 0
          %530 = vmatpush1.bf16.msra.mxu0 0
          %531 = vmatprep.subr.bf16.mxu0 0
          %532 = vmatpush1.bf16.msra.mxu0 0
          %533 = vmatprep.subr.bf16.mxu0 0
          %534 = vmatpush1.bf16.msra.mxu0 0
          %535 = vmatprep.subr.bf16.mxu0 0
          %536 = vmatpush1.bf16.msra.mxu0 0
          %537 = vmatprep.subr.bf16.mxu0 0
          %538 = vmatpush1.bf16.msra.mxu0 0
          %539 = vmatprep.subr.bf16.mxu0 0
          %540 = vmatpush1.bf16.msra.mxu0 0
          %541 = vmatprep.subr.bf16.mxu0 0
          %542 = vmatpush1.bf16.msra.mxu0 0
          %543 = vmatprep.subr.bf16.mxu0 0
          %544 = vmatpush1.bf16.msra.mxu0 0
          %545 = vmatprep.subr.bf16.mxu0 0
          %546 = vmatpush1.bf16.msra.mxu0 0
          %547 = vmatprep.subr.bf16.mxu0 0
          %548 = vmatpush1.bf16.msra.mxu0 0
          %549 = vmatprep.subr.bf16.mxu0 0
          %550 = vmatpush1.bf16.msra.mxu0 0
          %551 = vmatprep.subr.bf16.mxu0 0
          %552 = vmatpush1.bf16.msra.mxu0 0
          %553 = vmatprep.subr.bf16.mxu0 0
          %554 = vmatpush1.bf16.msra.mxu0 0
          %555 = vmatprep.subr.bf16.mxu0 0
          %556 = vmatpush1.bf16.msra.mxu0 0
          %557 = vmatprep.mubr.bf16.mxu0 0
          %558 = vmatmul.mubr.bf16.gmra.mrb[0].mxu0 %v523
          %v559 = vpop.f32.mrb[0].mxu0
          %v560 = vadd.f32 %v459, %v559
          %v561 = vpop.f32.mrb[0].mxu0
          %v562 = vadd.f32 %v463, %v561
          %v563 = vpop.f32.mrb[0].mxu0
          %v564 = vadd.f32 %v459, %v563
          %v565 = vpop.f32.mrb[0].mxu0
          %v566 = vadd.f32 %v463, %v565
          %567 = vdwg.mxu0
          %568 = vmatprep.subr.bf16.mxu0 %v508
          %569 = vmatpush1.bf16.msra.mxu0 %v507
          %570 = vmatprep.subr.bf16.mxu0 %v512
          %571 = vmatpush1.bf16.msra.mxu0 %v511
          %572 = vmatprep.subr.bf16.mxu0 0
          %573 = vmatpush1.bf16.msra.mxu0 0
          %574 = vmatprep.subr.bf16.mxu0 0
          %575 = vmatpush1.bf16.msra.mxu0 0
          %576 = vmatprep.subr.bf16.mxu0 0
          %577 = vmatpush1.bf16.msra.mxu0 0
          %578 = vmatprep.subr.bf16.mxu0 0
          %579 = vmatpush1.bf16.msra.mxu0 0
          %580 = vmatprep.subr.bf16.mxu0 0
          %581 = vmatpush1.bf16.msra.mxu0 0
          %582 = vmatprep.subr.bf16.mxu0 0
          %583 = vmatpush1.bf16.msra.mxu0 0
          %584 = vmatprep.subr.bf16.mxu0 0
          %585 = vmatpush1.bf16.msra.mxu0 0
          %586 = vmatprep.subr.bf16.mxu0 0
          %587 = vmatpush1.bf16.msra.mxu0 0
          %588 = vmatprep.subr.bf16.mxu0 0
          %589 = vmatpush1.bf16.msra.mxu0 0
          %590 = vmatprep.subr.bf16.mxu0 0
          %591 = vmatpush1.bf16.msra.mxu0 0
          %592 = vmatprep.subr.bf16.mxu0 0
          %593 = vmatpush1.bf16.msra.mxu0 0
          %594 = vmatprep.subr.bf16.mxu0 0
          %595 = vmatpush1.bf16.msra.mxu0 0
          %596 = vmatprep.subr.bf16.mxu0 0
          %597 = vmatpush1.bf16.msra.mxu0 0
          %598 = vmatprep.subr.bf16.mxu0 0
          %599 = vmatpush1.bf16.msra.mxu0 0
          %600 = vmatprep.mubr.bf16.mxu0 0
          %601 = vmatmul.mubr.bf16.gmra.mrb[0].mxu0 %v523
          %v602 = vpop.f32.mrb[0].mxu0
          %v603 = vadd.f32 %v467, %v602
          %v604 = vpop.f32.mrb[0].mxu0
          %v605 = vadd.f32 %v471, %v604
          %v606 = vpop.f32.mrb[0].mxu0
          %v607 = vadd.f32 %v467, %v606
          %v608 = vpop.f32.mrb[0].mxu0
          %v609 = vadd.f32 %v471, %v608
          %610 = vdwg.mxu0
          %v611 = vmul.f32 %v560, 0.35355338
          %v612 = vmul.f32 %v562, 0.35355338
          %v613 = vmul.f32 %v603, 0.35355338
          %v614 = vmul.f32 %v605, 0.35355338
          %v615 = vmul.f32 %v564, 0.35355338
          %v616 = vmul.f32 %v566, 0.35355338
          %v617 = vmul.f32 %v607, 0.35355338
          %v618 = vmul.f32 %v609, 0.35355338
          %v619 = vpack.c.bf16 %v615, %v611
          %v620 = vpack.c.bf16 %v616, %v612
          %v621 = vpack.c.bf16 %v617, %v613
          %v622 = vpack.c.bf16 %v618, %v614
          %623 = vst [vmem:[#allocation2] sm:$0xff] %v619
          %624 = vst [vmem:[#allocation2 + $0x8] sm:$0xff] %v620
          %625 = vst [vmem:[#allocation2 + $0x10] sm:$0xff] %v621
          %626 = vst [vmem:[#allocation2 + $0x18] sm:$0xff] %v622
          %vm627 = vcmask 7168
          %628 = vst.msk [vmem:[#allocation4] sm:$0xff] %vm627, -inf
          %629 = vst.msk [vmem:[#allocation4 + $0x8] sm:$0xff] %vm627, -inf
          %630 = vst.msk [vmem:[#allocation4 + $0x10] sm:$0xff] %vm627, -inf
          %631 = vst.msk [vmem:[#allocation4 + $0x18] sm:$0xff] %vm627, -inf
          %632 = vst.msk [vmem:[#allocation4 + $0x20] sm:$0xff] %vm627, -inf
          %633 = vst.msk [vmem:[#allocation4 + $0x28] sm:$0xff] %vm627, -inf
          %634 = vst.msk [vmem:[#allocation4 + $0x30] sm:$0xff] %vm627, -inf
          %635 = vst.msk [vmem:[#allocation4 + $0x38] sm:$0xff] %vm627, -inf
          %636 = vst.msk [vmem:[#allocation5] sm:$0xff] %vm627, 0.0
          %637 = vst.msk [vmem:[#allocation5 + $0x8] sm:$0xff] %vm627, 0.0
          %638 = vst.msk [vmem:[#allocation5 + $0x10] sm:$0xff] %vm627, 0.0
          %639 = vst.msk [vmem:[#allocation5 + $0x18] sm:$0xff] %vm627, 0.0
          %640 = vst.msk [vmem:[#allocation5 + $0x20] sm:$0xff] %vm627, 0.0
          %641 = vst.msk [vmem:[#allocation5 + $0x28] sm:$0xff] %vm627, 0.0
          %642 = vst.msk [vmem:[#allocation5 + $0x30] sm:$0xff] %vm627, 0.0
          %643 = vst.msk [vmem:[#allocation5 + $0x38] sm:$0xff] %vm627, 0.0
          %644 = vst [vmem:[#allocation3] sm:$0xff] 0.0
          %645 = vst [vmem:[#allocation3 + $0x8] sm:$0xff] 0.0
          %646 = vst [vmem:[#allocation3 + $0x10] sm:$0xff] 0.0
          %647 = vst [vmem:[#allocation3 + $0x18] sm:$0xff] 0.0
          %648 = vst [vmem:[#allocation3 + $0x20] sm:$0xff] 0.0
          %649 = vst [vmem:[#allocation3 + $0x28] sm:$0xff] 0.0
          %650 = vst [vmem:[#allocation3 + $0x30] sm:$0xff] 0.0
          %651 = vst [vmem:[#allocation3 + $0x38] sm:$0xff] 0.0
        $region76: #{tpu_custom_call.1} parent=51 // pred_fallthru
          _
        %v652 = vld [vmem:[%s386] sm:$0xf]
        %v653 = vld [vmem:[%s386 + $0x4] sm:$0xf]
        %v654 = vld [vmem:[#allocation12] sm:$0xff]
        %v655 = vld [vmem:[#allocation12 + $0x8] sm:$0xff]
        %v656 = vld [vmem:[#allocation12 + $0x10] sm:$0xff]
        %v657 = vld [vmem:[#allocation12 + $0x18] sm:$0xff]
        %v658 = vld [vmem:[#allocation12 + $0x20] sm:$0xff]
        %v659 = vld [vmem:[#allocation12 + $0x28] sm:$0xff]
        %v660 = vld [vmem:[#allocation12 + $0x30] sm:$0xff]
        %v661 = vld [vmem:[#allocation12 + $0x38] sm:$0xff]
        %v662 = vld [vmem:[#allocation12 + $0x40] sm:$0xff]
        %v663 = vld [vmem:[#allocation12 + $0x48] sm:$0xff]
        %v664 = vld [vmem:[#allocation12 + $0x50] sm:$0xff]
        %v665 = vld [vmem:[#allocation12 + $0x58] sm:$0xff]
        %v666 = vld [vmem:[#allocation12 + $0x60] sm:$0xff]
        %v667 = vld [vmem:[#allocation12 + $0x68] sm:$0xff]
        %v668 = vld [vmem:[#allocation12 + $0x70] sm:$0xff]
        %v669 = vld [vmem:[#allocation12 + $0x78] sm:$0xff]
        %v670 = vld [vmem:[%s5] sm:$0xff]
        %v672 = vlaneseq
        %v673 = vshrl.u32 %v672, 7
        %v674 = vsub.s32 0, %v673
        %v675 = vrot.slane %v670, %v674
        %v676 = vlaneseq
        %v677 = vshrl.u32 %v676, 7
        %v678 = vsub.s32 1, %v677
        %v679 = vrot.slane %v670, %v678
        %v680 = vlaneseq
        %v681 = vshrl.u32 %v680, 7
        %v682 = vsub.s32 2, %v681
        %v683 = vrot.slane %v670, %v682
        %v684 = vlaneseq
        %v685 = vshrl.u32 %v684, 7
        %v686 = vsub.s32 3, %v685
        %v687 = vrot.slane %v670, %v686
        %v688 = vlaneseq
        %v689 = vshrl.u32 %v688, 7
        %v690 = vsub.s32 4, %v689
        %v691 = vrot.slane %v670, %v690
        %v692 = vlaneseq
        %v693 = vshrl.u32 %v692, 7
        %v694 = vsub.s32 5, %v693
        %v695 = vrot.slane %v670, %v694
        %v696 = vlaneseq
        %v697 = vshrl.u32 %v696, 7
        %v698 = vsub.s32 6, %v697
        %v699 = vrot.slane %v670, %v698
        %v700 = vlaneseq
        %v701 = vshrl.u32 %v700, 7
        %v702 = vsub.s32 7, %v701
        %v703 = vrot.slane %v670, %v702
        %v714 = vunpack.c.l.b16 %v652
        %v715 = vunpack.c.l.b16 %v653
        %v716 = vpack.c.b16 %v715, %v714
        %v733 = vunpack.c.l.b16 %v654
        %v734 = vunpack.c.h.b16 %v654
        %v735 = vunpack.c.l.b16 %v655
        %v736 = vunpack.c.h.b16 %v655
        %v737 = vunpack.c.l.b16 %v656
        %v738 = vunpack.c.h.b16 %v656
        %v739 = vunpack.c.l.b16 %v657
        %v740 = vunpack.c.h.b16 %v657
        %v741 = vunpack.c.l.b16 %v658
        %v742 = vunpack.c.h.b16 %v658
        %v743 = vunpack.c.l.b16 %v659
        %v744 = vunpack.c.h.b16 %v659
        %v745 = vunpack.c.l.b16 %v660
        %v746 = vunpack.c.h.b16 %v660
        %v747 = vunpack.c.l.b16 %v661
        %v748 = vunpack.c.h.b16 %v661
        %v749 = vunpack.c.l.b16 %v662
        %v750 = vunpack.c.h.b16 %v662
        %v751 = vunpack.c.l.b16 %v663
        %v752 = vunpack.c.h.b16 %v663
        %v753 = vunpack.c.l.b16 %v664
        %v754 = vunpack.c.h.b16 %v664
        %v755 = vunpack.c.l.b16 %v665
        %v756 = vunpack.c.h.b16 %v665
        %v757 = vunpack.c.l.b16 %v666
        %v758 = vunpack.c.h.b16 %v666
        %v759 = vunpack.c.l.b16 %v667
        %v760 = vunpack.c.h.b16 %v667
        %v761 = vunpack.c.l.b16 %v668
        %v762 = vunpack.c.h.b16 %v668
        %v763 = vunpack.c.l.b16 %v669
        %v764 = vunpack.c.h.b16 %v669
        %v765 = vpack.c.b16 %v741, %v733
        %v766 = vpack.c.b16 %v742, %v734
        %v767 = vpack.c.b16 %v743, %v735
        %v768 = vpack.c.b16 %v744, %v736
        %v769 = vpack.c.b16 %v745, %v737
        %v770 = vpack.c.b16 %v746, %v738
        %v771 = vpack.c.b16 %v747, %v739
        %v772 = vpack.c.b16 %v748, %v740
        %v773 = vpack.c.b16 %v757, %v749
        %v774 = vpack.c.b16 %v758, %v750
        %v775 = vpack.c.b16 %v759, %v751
        %v776 = vpack.c.b16 %v760, %v752
        %v777 = vpack.c.b16 %v761, %v753
        %v778 = vpack.c.b16 %v762, %v754
        %v779 = vpack.c.b16 %v763, %v755
        %v780 = vpack.c.b16 %v764, %v756
        %vm797 = vcmask 261120
        %v799 = vsel %vm797, %v716, 0
        %801 = vmatprep.subr.bf16.mxu0 %v766
        %802 = vmatpush1.bf16.msra.mxu0 %v765
        %803 = vmatprep.subr.bf16.mxu0 %v774
        %804 = vmatpush1.bf16.msra.mxu0 %v773
        %805 = vmatprep.subr.bf16.mxu0 0
        %806 = vmatpush1.bf16.msra.mxu0 0
        %807 = vmatprep.subr.bf16.mxu0 0
        %808 = vmatpush1.bf16.msra.mxu0 0
        %809 = vmatprep.subr.bf16.mxu0 0
        %810 = vmatpush1.bf16.msra.mxu0 0
        %811 = vmatprep.subr.bf16.mxu0 0
        %812 = vmatpush1.bf16.msra.mxu0 0
        %813 = vmatprep.subr.bf16.mxu0 0
        %814 = vmatpush1.bf16.msra.mxu0 0
        %815 = vmatprep.subr.bf16.mxu0 0
        %816 = vmatpush1.bf16.msra.mxu0 0
        %817 = vmatprep.subr.bf16.mxu0 0
        %818 = vmatpush1.bf16.msra.mxu0 0
        %819 = vmatprep.subr.bf16.mxu0 0
        %820 = vmatpush1.bf16.msra.mxu0 0
        %821 = vmatprep.subr.bf16.mxu0 0
        %822 = vmatpush1.bf16.msra.mxu0 0
        %823 = vmatprep.subr.bf16.mxu0 0
        %824 = vmatpush1.bf16.msra.mxu0 0
        %825 = vmatprep.subr.bf16.mxu0 0
        %826 = vmatpush1.bf16.msra.mxu0 0
        %827 = vmatprep.subr.bf16.mxu0 0
        %828 = vmatpush1.bf16.msra.mxu0 0
        %829 = vmatprep.subr.bf16.mxu0 0
        %830 = vmatpush1.bf16.msra.mxu0 0
        %831 = vmatprep.subr.bf16.mxu0 0
        %832 = vmatpush1.bf16.msra.mxu0 0
        %833 = vmatprep.mubr.bf16.mxu0 0
        %834 = vmatmul.mubr.bf16.gmra.mrb[0].mxu0 %v799
        %v835 = vpop.f32.mrb[0].mxu0
        %v836 = vadd.f32 %v675, %v835
        %v837 = vpop.f32.mrb[0].mxu0
        %v838 = vadd.f32 %v679, %v837
        %v839 = vpop.f32.mrb[0].mxu0
        %v840 = vadd.f32 %v675, %v839
        %v841 = vpop.f32.mrb[0].mxu0
        %v842 = vadd.f32 %v679, %v841
        %843 = vdwg.mxu0
        %844 = vmatprep.subr.bf16.mxu0 %v768
        %845 = vmatpush1.bf16.msra.mxu0 %v767
        %846 = vmatprep.subr.bf16.mxu0 %v776
        %847 = vmatpush1.bf16.msra.mxu0 %v775
        %848 = vmatprep.subr.bf16.mxu0 0
        %849 = vmatpush1.bf16.msra.mxu0 0
        %850 = vmatprep.subr.bf16.mxu0 0
        %851 = vmatpush1.bf16.msra.mxu0 0
        %852 = vmatprep.subr.bf16.mxu0 0
        %853 = vmatpush1.bf16.msra.mxu0 0
        %854 = vmatprep.subr.bf16.mxu0 0
        %855 = vmatpush1.bf16.msra.mxu0 0
        %856 = vmatprep.subr.bf16.mxu0 0
        %857 = vmatpush1.bf16.msra.mxu0 0
        %858 = vmatprep.subr.bf16.mxu0 0
        %859 = vmatpush1.bf16.msra.mxu0 0
        %860 = vmatprep.subr.bf16.mxu0 0
        %861 = vmatpush1.bf16.msra.mxu0 0
        %862 = vmatprep.subr.bf16.mxu0 0
        %863 = vmatpush1.bf16.msra.mxu0 0
        %864 = vmatprep.subr.bf16.mxu0 0
        %865 = vmatpush1.bf16.msra.mxu0 0
        %866 = vmatprep.subr.bf16.mxu0 0
        %867 = vmatpush1.bf16.msra.mxu0 0
        %868 = vmatprep.subr.bf16.mxu0 0
        %869 = vmatpush1.bf16.msra.mxu0 0
        %870 = vmatprep.subr.bf16.mxu0 0
        %871 = vmatpush1.bf16.msra.mxu0 0
        %872 = vmatprep.subr.bf16.mxu0 0
        %873 = vmatpush1.bf16.msra.mxu0 0
        %874 = vmatprep.subr.bf16.mxu0 0
        %875 = vmatpush1.bf16.msra.mxu0 0
        %876 = vmatprep.mubr.bf16.mxu0 0
        %877 = vmatmul.mubr.bf16.gmra.mrb[0].mxu0 %v799
        %v878 = vpop.f32.mrb[0].mxu0
        %v879 = vadd.f32 %v683, %v878
        %v880 = vpop.f32.mrb[0].mxu0
        %v881 = vadd.f32 %v687, %v880
        %v882 = vpop.f32.mrb[0].mxu0
        %v883 = vadd.f32 %v683, %v882
        %v884 = vpop.f32.mrb[0].mxu0
        %v885 = vadd.f32 %v687, %v884
        %886 = vdwg.mxu0
        %887 = vmatprep.subr.bf16.mxu0 %v770
        %888 = vmatpush1.bf16.msra.mxu0 %v769
        %889 = vmatprep.subr.bf16.mxu0 %v778
        %890 = vmatpush1.bf16.msra.mxu0 %v777
        %891 = vmatprep.subr.bf16.mxu0 0
        %892 = vmatpush1.bf16.msra.mxu0 0
        %893 = vmatprep.subr.bf16.mxu0 0
        %894 = vmatpush1.bf16.msra.mxu0 0
        %895 = vmatprep.subr.bf16.mxu0 0
        %896 = vmatpush1.bf16.msra.mxu0 0
        %897 = vmatprep.subr.bf16.mxu0 0
        %898 = vmatpush1.bf16.msra.mxu0 0
        %899 = vmatprep.subr.bf16.mxu0 0
        %900 = vmatpush1.bf16.msra.mxu0 0
        %901 = vmatprep.subr.bf16.mxu0 0
        %902 = vmatpush1.bf16.msra.mxu0 0
        %903 = vmatprep.subr.bf16.mxu0 0
        %904 = vmatpush1.bf16.msra.mxu0 0
        %905 = vmatprep.subr.bf16.mxu0 0
        %906 = vmatpush1.bf16.msra.mxu0 0
        %907 = vmatprep.subr.bf16.mxu0 0
        %908 = vmatpush1.bf16.msra.mxu0 0
        %909 = vmatprep.subr.bf16.mxu0 0
        %910 = vmatpush1.bf16.msra.mxu0 0
        %911 = vmatprep.subr.bf16.mxu0 0
        %912 = vmatpush1.bf16.msra.mxu0 0
        %913 = vmatprep.subr.bf16.mxu0 0
        %914 = vmatpush1.bf16.msra.mxu0 0
        %915 = vmatprep.subr.bf16.mxu0 0
        %916 = vmatpush1.bf16.msra.mxu0 0
        %917 = vmatprep.subr.bf16.mxu0 0
        %918 = vmatpush1.bf16.msra.mxu0 0
        %919 = vmatprep.mubr.bf16.mxu0 0
        %920 = vmatmul.mubr.bf16.gmra.mrb[0].mxu0 %v799
        %v921 = vpop.f32.mrb[0].mxu0
        %v922 = vadd.f32 %v691, %v921
        %v923 = vpop.f32.mrb[0].mxu0
        %v924 = vadd.f32 %v695, %v923
        %v925 = vpop.f32.mrb[0].mxu0
        %v926 = vadd.f32 %v691, %v925
        %v927 = vpop.f32.mrb[0].mxu0
        %v928 = vadd.f32 %v695, %v927
        %929 = vdwg.mxu0
        %930 = vmatprep.subr.bf16.mxu0 %v772
        %931 = vmatpush1.bf16.msra.mxu0 %v771
        %932 = vmatprep.subr.bf16.mxu0 %v780
        %933 = vmatpush1.bf16.msra.mxu0 %v779
        %934 = vmatprep.subr.bf16.mxu0 0
        %935 = vmatpush1.bf16.msra.mxu0 0
        %936 = vmatprep.subr.bf16.mxu0 0
        %937 = vmatpush1.bf16.msra.mxu0 0
        %938 = vmatprep.subr.bf16.mxu0 0
        %939 = vmatpush1.bf16.msra.mxu0 0
        %940 = vmatprep.subr.bf16.mxu0 0
        %941 = vmatpush1.bf16.msra.mxu0 0
        %942 = vmatprep.subr.bf16.mxu0 0
        %943 = vmatpush1.bf16.msra.mxu0 0
        %944 = vmatprep.subr.bf16.mxu0 0
        %945 = vmatpush1.bf16.msra.mxu0 0
        %946 = vmatprep.subr.bf16.mxu0 0
        %947 = vmatpush1.bf16.msra.mxu0 0
        %948 = vmatprep.subr.bf16.mxu0 0
        %949 = vmatpush1.bf16.msra.mxu0 0
        %950 = vmatprep.subr.bf16.mxu0 0
        %951 = vmatpush1.bf16.msra.mxu0 0
        %952 = vmatprep.subr.bf16.mxu0 0
        %953 = vmatpush1.bf16.msra.mxu0 0
        %954 = vmatprep.subr.bf16.mxu0 0
        %955 = vmatpush1.bf16.msra.mxu0 0
        %956 = vmatprep.subr.bf16.mxu0 0
        %957 = vmatpush1.bf16.msra.mxu0 0
        %958 = vmatprep.subr.bf16.mxu0 0
        %959 = vmatpush1.bf16.msra.mxu0 0
        %960 = vmatprep.subr.bf16.mxu0 0
        %961 = vmatpush1.bf16.msra.mxu0 0
        %962 = vmatprep.mubr.bf16.mxu0 0
        %963 = vmatmul.mubr.bf16.gmra.mrb[0].mxu0 %v799
        %v964 = vpop.f32.mrb[0].mxu0
        %v965 = vadd.f32 %v699, %v964
        %v966 = vpop.f32.mrb[0].mxu0
        %v967 = vadd.f32 %v703, %v966
        %v968 = vpop.f32.mrb[0].mxu0
        %v969 = vadd.f32 %v699, %v968
        %v970 = vpop.f32.mrb[0].mxu0
        %v971 = vadd.f32 %v703, %v970
        %972 = vdwg.mxu0
        %v973 = vpack.c.bf16 %v840, %v836
        %v974 = vpack.c.bf16 %v842, %v838
        %v975 = vpack.c.bf16 %v883, %v879
        %v976 = vpack.c.bf16 %v885, %v881
        %v977 = vpack.c.bf16 %v926, %v922
        %v978 = vpack.c.bf16 %v928, %v924
        %v979 = vpack.c.bf16 %v969, %v965
        %v980 = vpack.c.bf16 %v971, %v967
        %v981 = vld [vmem:[#allocation2] sm:$0xff]
        %982 = vmatprep.subr.bf16.mxu0 0
        %983 = vmatpush1.bf16.xpose.msra.mxu0 %v973
        %984 = vmatprep.subr.bf16.mxu0 0
        %985 = vmatpush1.bf16.xpose.msra.mxu0 0
        %986 = vmatprep.subr.bf16.mxu0 0
        %987 = vmatpush1.bf16.xpose.msra.mxu0 0
        %988 = vmatprep.subr.bf16.mxu0 0
        %989 = vmatpush1.bf16.xpose.msra.mxu0 0
        %990 = vmatprep.subr.bf16.mxu0 0
        %991 = vmatpush1.bf16.xpose.msra.mxu0 0
        %992 = vmatprep.subr.bf16.mxu0 0
        %993 = vmatpush1.bf16.xpose.msra.mxu0 0
        %994 = vmatprep.subr.bf16.mxu0 0
        %995 = vmatpush1.bf16.xpose.msra.mxu0 0
        %996 = vmatprep.subr.bf16.mxu0 0
        %997 = vmatpush1.bf16.xpose.msra.mxu0 0
        %998 = vmatprep.subr.bf16.mxu0 0
        %999 = vmatpush1.bf16.xpose.msra.mxu0 0
        %1000 = vmatprep.subr.bf16.mxu0 0
        %1001 = vmatpush1.bf16.xpose.msra.mxu0 0
        %1002 = vmatprep.subr.bf16.mxu0 0
        %1003 = vmatpush1.bf16.xpose.msra.mxu0 0
        %1004 = vmatprep.subr.bf16.mxu0 0
        %1005 = vmatpush1.bf16.xpose.msra.mxu0 0
        %1006 = vmatprep.subr.bf16.mxu0 0
        %1007 = vmatpush1.bf16.xpose.msra.mxu0 0
        %1008 = vmatprep.subr.bf16.mxu0 0
        %1009 = vmatpush1.bf16.xpose.msra.mxu0 0
        %1010 = vmatprep.subr.bf16.mxu0 0
        %1011 = vmatpush1.bf16.xpose.msra.mxu0 0
        %1012 = vmatprep.subr.bf16.mxu0 0
        %1013 = vmatpush1.bf16.xpose.msra.mxu0 0
        %1014 = vmatprep.mubr.bf16.mxu0 0
        %1015 = vmatmul.mubr.bf16.gmra.mrb[0].mxu0 %v981
        %v1016 = vpop.f32.mrb[0].mxu0
        %v1017 = vadd.f32 0.0, %v1016
        %v1018 = vpop.f32.mrb[0].mxu0
        %v1019 = vpop.f32.mrb[0].mxu0
        %v1020 = vadd.f32 0.0, %v1019
        %v1021 = vpop.f32.mrb[0].mxu0
        %1022 = vdwg.mxu0
        %v1023 = vld [vmem:[#allocation4] sm:$0xff]
        %v1024 = vld [vmem:[#allocation4 + $0x8] sm:$0xff]
        %v1025 = vld [vmem:[#allocation5] sm:$0xff]
        %v1026 = vld [vmem:[#allocation5 + $0x8] sm:$0xff]
        %vm1027 = vcmask 130048
        %v1028 = vsel %vm1027, %v1017, -inf
        %1029 = vmax.xlane.f32.xlu0 %v1028
        %v1030 = vpop.xlane.xlu0 %1029
        %v1031 = vsel %vm1027, %v1020, -inf
        %1032 = vmax.xlane.f32.xlu0 %v1031
        %v1033 = vpop.xlane.xlu0 %1032
        %v1034 = vmax.f32 %v1023, %v1030
        %v1035 = vmax.f32 %v1024, %v1033
        %v1036 = vsub.f32 %v1023, %v1034
        %v1037 = vsub.f32 %v1024, %v1035
        %v1038 = vmul.f32 %v1036, 1.442695
        %v1039 = vpow.pop %v1038
        %v1040 = vmul.f32 %v1037, 1.442695
        %v1041 = vpow.pop %v1040
        %1043 = vset.pattern.permute.xlu0 0
        %1044 = vperm.xlu0 %1043, %v1034
        %v1045 = vpop.permute.xlu0 %1044
        %1048 = vset.pattern.permute.xlu0 0
        %1049 = vperm.xlu0 %1048, %v1035
        %v1050 = vpop.permute.xlu0 %1049
        %v1052 = vsub.f32 %v1017, %v1045
        %v1053 = vsub.f32 %v1020, %v1050
        %v1054 = vmul.f32 %v1052, 1.442695
        %v1055 = vpow.pop %v1054
        %v1056 = vmul.f32 %v1053, 1.442695
        %v1057 = vpow.pop %v1056
        %v1058 = vmul.f32 %v1039, %v1025
        %v1059 = vmul.f32 %v1041, %v1026
        %v1060 = vsel %vm1027, %v1055, 0.0
        %1061 = vadd.xlane.f32.xlu0 %v1060
        %v1062 = vpop.xlane.xlu0 %1061
        %v1063 = vsel %vm1027, %v1057, 0.0
        %1064 = vadd.xlane.f32.xlu0 %v1063
        %v1065 = vpop.xlane.xlu0 %1064
        %v1066 = vadd.f32 %v1058, %v1062
        %v1067 = vadd.f32 %v1059, %v1065
        %vm1068 = vcmask 7168
        %1069 = vst.msk [vmem:[#allocation5] sm:$0xff] %vm1068, %v1066
        %1070 = vst.msk [vmem:[#allocation5 + $0x8] sm:$0xff] %vm1068, %v1067
        %1071 = vst.msk [vmem:[#allocation4] sm:$0xff] %vm1068, %v1034
        %1072 = vst.msk [vmem:[#allocation4 + $0x8] sm:$0xff] %vm1068, %v1035
        %v1073 = vld [vmem:[#allocation3] sm:$0xff]
        %v1074 = vld [vmem:[#allocation3 + $0x20] sm:$0xff]
        %1076 = vset.pattern.permute.xlu0 0
        %1077 = vperm.xlu0 %1076, %v1039
        %v1078 = vpop.permute.xlu0 %1077
        %1081 = vset.pattern.permute.xlu0 0
        %1082 = vperm.xlu0 %1081, %v1041
        %v1083 = vpop.permute.xlu0 %1082
        %v1085 = vmul.f32 %v1073, %v1078
        %v1086 = vmul.f32 %v1074, %v1083
        %v1087 = vpack.c.bf16 %v1057, %v1055
        %v1089 = vsel %vm1027, %v1087, 0
        %1091 = vmatprep.subr.bf16.mxu0 0
        %1092 = vmatpush1.bf16.msra.mxu0 %v977
        %1093 = vmatprep.subr.bf16.mxu0 0
        %1094 = vmatpush1.bf16.msra.mxu0 0
        %1095 = vmatprep.subr.bf16.mxu0 0
        %1096 = vmatpush1.bf16.msra.mxu0 0
        %1097 = vmatprep.subr.bf16.mxu0 0
        %1098 = vmatpush1.bf16.msra.mxu0 0
        %1099 = vmatprep.subr.bf16.mxu0 0
        %1100 = vmatpush1.bf16.msra.mxu0 0
        %1101 = vmatprep.subr.bf16.mxu0 0
        %1102 = vmatpush1.bf16.msra.mxu0 0
        %1103 = vmatprep.subr.bf16.mxu0 0
        %1104 = vmatpush1.bf16.msra.mxu0 0
        %1105 = vmatprep.subr.bf16.mxu0 0
        %1106 = vmatpush1.bf16.msra.mxu0 0
        %1107 = vmatprep.subr.bf16.mxu0 0
        %1108 = vmatpush1.bf16.msra.mxu0 0
        %1109 = vmatprep.subr.bf16.mxu0 0
        %1110 = vmatpush1.bf16.msra.mxu0 0
        %1111 = vmatprep.subr.bf16.mxu0 0
        %1112 = vmatpush1.bf16.msra.mxu0 0
        %1113 = vmatprep.subr.bf16.mxu0 0
        %1114 = vmatpush1.bf16.msra.mxu0 0
        %1115 = vmatprep.subr.bf16.mxu0 0
        %1116 = vmatpush1.bf16.msra.mxu0 0
        %1117 = vmatprep.subr.bf16.mxu0 0
        %1118 = vmatpush1.bf16.msra.mxu0 0
        %1119 = vmatprep.subr.bf16.mxu0 0
        %1120 = vmatpush1.bf16.msra.mxu0 0
        %1121 = vmatprep.subr.bf16.mxu0 0
        %1122 = vmatpush1.bf16.msra.mxu0 0
        %1123 = vmatprep.mubr.bf16.mxu0 0
        %1124 = vmatmul.mubr.bf16.gmra.mrb[0].mxu0 %v1089
        %v1125 = vpop.f32.mrb[0].mxu0
        %v1126 = vadd.f32 0.0, %v1125
        %v1127 = vpop.f32.mrb[0].mxu0
        %v1128 = vpop.f32.mrb[0].mxu0
        %v1129 = vadd.f32 0.0, %v1128
        %v1130 = vpop.f32.mrb[0].mxu0
        %1131 = vdwg.mxu0
        %v1132 = vadd.f32 %v1085, %v1126
        %v1133 = vadd.f32 %v1086, %v1129
        %1134 = vst [vmem:[#allocation3] sm:$0xff] %v1132
        %1135 = vst [vmem:[#allocation3 + $0x20] sm:$0xff] %v1133
        %v1136 = vld [vmem:[#allocation2 + $0x8] sm:$0xff]
        %1137 = vmatprep.subr.bf16.mxu0 0
        %1138 = vmatpush1.bf16.xpose.msra.mxu0 %v974
        %1139 = vmatprep.subr.bf16.mxu0 0
        %1140 = vmatpush1.bf16.xpose.msra.mxu0 0
        %1141 = vmatprep.subr.bf16.mxu0 0
        %1142 = vmatpush1.bf16.xpose.msra.mxu0 0
        %1143 = vmatprep.subr.bf16.mxu0 0
        %1144 = vmatpush1.bf16.xpose.msra.mxu0 0
        %1145 = vmatprep.subr.bf16.mxu0 0
        %1146 = vmatpush1.bf16.xpose.msra.mxu0 0
        %1147 = vmatprep.subr.bf16.mxu0 0
        %1148 = vmatpush1.bf16.xpose.msra.mxu0 0
        %1149 = vmatprep.subr.bf16.mxu0 0
        %1150 = vmatpush1.bf16.xpose.msra.mxu0 0
        %1151 = vmatprep.subr.bf16.mxu0 0
        %1152 = vmatpush1.bf16.xpose.msra.mxu0 0
        %1153 = vmatprep.subr.bf16.mxu0 0
        %1154 = vmatpush1.bf16.xpose.msra.mxu0 0
        %1155 = vmatprep.subr.bf16.mxu0 0
        %1156 = vmatpush1.bf16.xpose.msra.mxu0 0
        %1157 = vmatprep.subr.bf16.mxu0 0
        %1158 = vmatpush1.bf16.xpose.msra.mxu0 0
        %1159 = vmatprep.subr.bf16.mxu0 0
        %1160 = vmatpush1.bf16.xpose.msra.mxu0 0
        %1161 = vmatprep.subr.bf16.mxu0 0
        %1162 = vmatpush1.bf16.xpose.msra.mxu0 0
        %1163 = vmatprep.subr.bf16.mxu0 0
        %1164 = vmatpush1.bf16.xpose.msra.mxu0 0
        %1165 = vmatprep.subr.bf16.mxu0 0
        %1166 = vmatpush1.bf16.xpose.msra.mxu0 0
        %1167 = vmatprep.subr.bf16.mxu0 0
        %1168 = vmatpush1.bf16.xpose.msra.mxu0 0
        %1169 = vmatprep.mubr.bf16.mxu0 0
        %1170 = vmatmul.mubr.bf16.gmra.mrb[0].mxu0 %v1136
        %v1171 = vpop.f32.mrb[0].mxu0
        %v1172 = vadd.f32 0.0, %v1171
        %v1173 = vpop.f32.mrb[0].mxu0
        %v1174 = vpop.f32.mrb[0].mxu0
        %v1175 = vadd.f32 0.0, %v1174
        %v1176 = vpop.f32.mrb[0].mxu0
        %1177 = vdwg.mxu0
        %s1178 = scalar_lea.vmem [#allocation4], 16
        %v1179 = vld [vmem:[%s1178] sm:$0xff]
        %v1180 = vld [vmem:[%s1178 + $0x8] sm:$0xff]
        %s1181 = scalar_lea.vmem [#allocation5], 16
        %v1182 = vld [vmem:[%s1181] sm:$0xff]
        %v1183 = vld [vmem:[%s1181 + $0x8] sm:$0xff]
        %v1184 = vsel %vm1027, %v1172, -inf
        %1185 = vmax.xlane.f32.xlu0 %v1184
        %v1186 = vpop.xlane.xlu0 %1185
        %v1187 = vsel %vm1027, %v1175, -inf
        %1188 = vmax.xlane.f32.xlu0 %v1187
        %v1189 = vpop.xlane.xlu0 %1188
        %v1190 = vmax.f32 %v1179, %v1186
        %v1191 = vmax.f32 %v1180, %v1189
        %v1192 = vsub.f32 %v1179, %v1190
        %v1193 = vsub.f32 %v1180, %v1191
        %v1194 = vmul.f32 %v1192, 1.442695
        %v1195 = vpow.pop %v1194
        %v1196 = vmul.f32 %v1193, 1.442695
        %v1197 = vpow.pop %v1196
        %1199 = vset.pattern.permute.xlu0 0
        %1200 = vperm.xlu0 %1199, %v1190
        %v1201 = vpop.permute.xlu0 %1200
        %1204 = vset.pattern.permute.xlu0 0
        %1205 = vperm.xlu0 %1204, %v1191
        %v1206 = vpop.permute.xlu0 %1205
        %v1208 = vsub.f32 %v1172, %v1201
        %v1209 = vsub.f32 %v1175, %v1206
        %v1210 = vmul.f32 %v1208, 1.442695
        %v1211 = vpow.pop %v1210
        %v1212 = vmul.f32 %v1209, 1.442695
        %v1213 = vpow.pop %v1212
        %v1214 = vmul.f32 %v1195, %v1182
        %v1215 = vmul.f32 %v1197, %v1183
        %v1216 = vsel %vm1027, %v1211, 0.0
        %1217 = vadd.xlane.f32.xlu0 %v1216
        %v1218 = vpop.xlane.xlu0 %1217
        %v1219 = vsel %vm1027, %v1213, 0.0
        %1220 = vadd.xlane.f32.xlu0 %v1219
        %v1221 = vpop.xlane.xlu0 %1220
        %v1222 = vadd.f32 %v1214, %v1218
        %v1223 = vadd.f32 %v1215, %v1221
        %1224 = vst.msk [vmem:[%s1181] sm:$0xff] %vm1068, %v1222
        %1225 = vst.msk [vmem:[%s1181 + $0x8] sm:$0xff] %vm1068, %v1223
        %1226 = vst.msk [vmem:[%s1178] sm:$0xff] %vm1068, %v1190
        %1227 = vst.msk [vmem:[%s1178 + $0x8] sm:$0xff] %vm1068, %v1191
        %v1228 = vld [vmem:[#allocation3 + $0x8] sm:$0xff]
        %v1229 = vld [vmem:[#allocation3 + $0x28] sm:$0xff]
        %1231 = vset.pattern.permute.xlu0 0
        %1232 = vperm.xlu0 %1231, %v1195
        %v1233 = vpop.permute.xlu0 %1232
        %1236 = vset.pattern.permute.xlu0 0
        %1237 = vperm.xlu0 %1236, %v1197
        %v1238 = vpop.permute.xlu0 %1237
        %v1240 = vmul.f32 %v1228, %v1233
        %v1241 = vmul.f32 %v1229, %v1238
        %v1242 = vpack.c.bf16 %v1213, %v1211
        %v1244 = vsel %vm1027, %v1242, 0
        %1246 = vmatprep.subr.bf16.mxu0 0
        %1247 = vmatpush1.bf16.msra.mxu0 %v978
        %1248 = vmatprep.subr.bf16.mxu0 0
        %1249 = vmatpush1.bf16.msra.mxu0 0
        %1250 = vmatprep.subr.bf16.mxu0 0
        %1251 = vmatpush1.bf16.msra.mxu0 0
        %1252 = vmatprep.subr.bf16.mxu0 0
        %1253 = vmatpush1.bf16.msra.mxu0 0
        %1254 = vmatprep.subr.bf16.mxu0 0
        %1255 = vmatpush1.bf16.msra.mxu0 0
        %1256 = vmatprep.subr.bf16.mxu0 0
        %1257 = vmatpush1.bf16.msra.mxu0 0
        %1258 = vmatprep.subr.bf16.mxu0 0
        %1259 = vmatpush1.bf16.msra.mxu0 0
        %1260 = vmatprep.subr.bf16.mxu0 0
        %1261 = vmatpush1.bf16.msra.mxu0 0
        %1262 = vmatprep.subr.bf16.mxu0 0
        %1263 = vmatpush1.bf16.msra.mxu0 0
        %1264 = vmatprep.subr.bf16.mxu0 0
        %1265 = vmatpush1.bf16.msra.mxu0 0
        %1266 = vmatprep.subr.bf16.mxu0 0
        %1267 = vmatpush1.bf16.msra.mxu0 0
        %1268 = vmatprep.subr.bf16.mxu0 0
        %1269 = vmatpush1.bf16.msra.mxu0 0
        %1270 = vmatprep.subr.bf16.mxu0 0
        %1271 = vmatpush1.bf16.msra.mxu0 0
        %1272 = vmatprep.subr.bf16.mxu0 0
        %1273 = vmatpush1.bf16.msra.mxu0 0
        %1274 = vmatprep.subr.bf16.mxu0 0
        %1275 = vmatpush1.bf16.msra.mxu0 0
        %1276 = vmatprep.subr.bf16.mxu0 0
        %1277 = vmatpush1.bf16.msra.mxu0 0
        %1278 = vmatprep.mubr.bf16.mxu0 0
        %1279 = vmatmul.mubr.bf16.gmra.mrb[0].mxu0 %v1244
        %v1280 = vpop.f32.mrb[0].mxu0
        %v1281 = vadd.f32 0.0, %v1280
        %v1282 = vpop.f32.mrb[0].mxu0
        %v1283 = vpop.f32.mrb[0].mxu0
        %v1284 = vadd.f32 0.0, %v1283
        %v1285 = vpop.f32.mrb[0].mxu0
        %1286 = vdwg.mxu0
        %v1287 = vadd.f32 %v1240, %v1281
        %v1288 = vadd.f32 %v1241, %v1284
        %1289 = vst [vmem:[#allocation3 + $0x8] sm:$0xff] %v1287
        %1290 = vst [vmem:[#allocation3 + $0x28] sm:$0xff] %v1288
        %v1291 = vld [vmem:[#allocation2 + $0x10] sm:$0xff]
        %1292 = vmatprep.subr.bf16.mxu0 0
        %1293 = vmatpush1.bf16.xpose.msra.mxu0 %v975
        %1294 = vmatprep.subr.bf16.mxu0 0
        %1295 = vmatpush1.bf16.xpose.msra.mxu0 0
        %1296 = vmatprep.subr.bf16.mxu0 0
        %1297 = vmatpush1.bf16.xpose.msra.mxu0 0
        %1298 = vmatprep.subr.bf16.mxu0 0
        %1299 = vmatpush1.bf16.xpose.msra.mxu0 0
        %1300 = vmatprep.subr.bf16.mxu0 0
        %1301 = vmatpush1.bf16.xpose.msra.mxu0 0
        %1302 = vmatprep.subr.bf16.mxu0 0
        %1303 = vmatpush1.bf16.xpose.msra.mxu0 0
        %1304 = vmatprep.subr.bf16.mxu0 0
        %1305 = vmatpush1.bf16.xpose.msra.mxu0 0
        %1306 = vmatprep.subr.bf16.mxu0 0
        %1307 = vmatpush1.bf16.xpose.msra.mxu0 0
        %1308 = vmatprep.subr.bf16.mxu0 0
        %1309 = vmatpush1.bf16.xpose.msra.mxu0 0
        %1310 = vmatprep.subr.bf16.mxu0 0
        %1311 = vmatpush1.bf16.xpose.msra.mxu0 0
        %1312 = vmatprep.subr.bf16.mxu0 0
        %1313 = vmatpush1.bf16.xpose.msra.mxu0 0
        %1314 = vmatprep.subr.bf16.mxu0 0
        %1315 = vmatpush1.bf16.xpose.msra.mxu0 0
        %1316 = vmatprep.subr.bf16.mxu0 0
        %1317 = vmatpush1.bf16.xpose.msra.mxu0 0
        %1318 = vmatprep.subr.bf16.mxu0 0
        %1319 = vmatpush1.bf16.xpose.msra.mxu0 0
        %1320 = vmatprep.subr.bf16.mxu0 0
        %1321 = vmatpush1.bf16.xpose.msra.mxu0 0
        %1322 = vmatprep.subr.bf16.mxu0 0
        %1323 = vmatpush1.bf16.xpose.msra.mxu0 0
        %1324 = vmatprep.mubr.bf16.mxu0 0
        %1325 = vmatmul.mubr.bf16.gmra.mrb[0].mxu0 %v1291
        %v1326 = vpop.f32.mrb[0].mxu0
        %v1327 = vadd.f32 0.0, %v1326
        %v1328 = vpop.f32.mrb[0].mxu0
        %v1329 = vpop.f32.mrb[0].mxu0
        %v1330 = vadd.f32 0.0, %v1329
        %v1331 = vpop.f32.mrb[0].mxu0
        %1332 = vdwg.mxu0
        %s1333 = scalar_lea.vmem [#allocation4], 32
        %v1334 = vld [vmem:[%s1333] sm:$0xff]
        %v1335 = vld [vmem:[%s1333 + $0x8] sm:$0xff]
        %s1336 = scalar_lea.vmem [#allocation5], 32
        %v1337 = vld [vmem:[%s1336] sm:$0xff]
        %v1338 = vld [vmem:[%s1336 + $0x8] sm:$0xff]
        %v1339 = vsel %vm1027, %v1327, -inf
        %1340 = vmax.xlane.f32.xlu0 %v1339
        %v1341 = vpop.xlane.xlu0 %1340
        %v1342 = vsel %vm1027, %v1330, -inf
        %1343 = vmax.xlane.f32.xlu0 %v1342
        %v1344 = vpop.xlane.xlu0 %1343
        %v1345 = vmax.f32 %v1334, %v1341
        %v1346 = vmax.f32 %v1335, %v1344
        %v1347 = vsub.f32 %v1334, %v1345
        %v1348 = vsub.f32 %v1335, %v1346
        %v1349 = vmul.f32 %v1347, 1.442695
        %v1350 = vpow.pop %v1349
        %v1351 = vmul.f32 %v1348, 1.442695
        %v1352 = vpow.pop %v1351
        %1354 = vset.pattern.permute.xlu0 0
        %1355 = vperm.xlu0 %1354, %v1345
        %v1356 = vpop.permute.xlu0 %1355
        %1359 = vset.pattern.permute.xlu0 0
        %1360 = vperm.xlu0 %1359, %v1346
        %v1361 = vpop.permute.xlu0 %1360
        %v1363 = vsub.f32 %v1327, %v1356
        %v1364 = vsub.f32 %v1330, %v1361
        %v1365 = vmul.f32 %v1363, 1.442695
        %v1366 = vpow.pop %v1365
        %v1367 = vmul.f32 %v1364, 1.442695
        %v1368 = vpow.pop %v1367
        %v1369 = vmul.f32 %v1350, %v1337
        %v1370 = vmul.f32 %v1352, %v1338
        %v1371 = vsel %vm1027, %v1366, 0.0
        %1372 = vadd.xlane.f32.xlu0 %v1371
        %v1373 = vpop.xlane.xlu0 %1372
        %v1374 = vsel %vm1027, %v1368, 0.0
        %1375 = vadd.xlane.f32.xlu0 %v1374
        %v1376 = vpop.xlane.xlu0 %1375
        %v1377 = vadd.f32 %v1369, %v1373
        %v1378 = vadd.f32 %v1370, %v1376
        %1379 = vst.msk [vmem:[%s1336] sm:$0xff] %vm1068, %v1377
        %1380 = vst.msk [vmem:[%s1336 + $0x8] sm:$0xff] %vm1068, %v1378
        %1381 = vst.msk [vmem:[%s1333] sm:$0xff] %vm1068, %v1345
        %1382 = vst.msk [vmem:[%s1333 + $0x8] sm:$0xff] %vm1068, %v1346
        %v1383 = vld [vmem:[#allocation3 + $0x10] sm:$0xff]
        %v1384 = vld [vmem:[#allocation3 + $0x30] sm:$0xff]
        %1386 = vset.pattern.permute.xlu0 0
        %1387 = vperm.xlu0 %1386, %v1350
        %v1388 = vpop.permute.xlu0 %1387
        %1391 = vset.pattern.permute.xlu0 0
        %1392 = vperm.xlu0 %1391, %v1352
        %v1393 = vpop.permute.xlu0 %1392
        %v1395 = vmul.f32 %v1383, %v1388
        %v1396 = vmul.f32 %v1384, %v1393
        %v1397 = vpack.c.bf16 %v1368, %v1366
        %v1399 = vsel %vm1027, %v1397, 0
        %1401 = vmatprep.subr.bf16.mxu0 0
        %1402 = vmatpush1.bf16.msra.mxu0 %v979
        %1403 = vmatprep.subr.bf16.mxu0 0
        %1404 = vmatpush1.bf16.msra.mxu0 0
        %1405 = vmatprep.subr.bf16.mxu0 0
        %1406 = vmatpush1.bf16.msra.mxu0 0
        %1407 = vmatprep.subr.bf16.mxu0 0
        %1408 = vmatpush1.bf16.msra.mxu0 0
        %1409 = vmatprep.subr.bf16.mxu0 0
        %1410 = vmatpush1.bf16.msra.mxu0 0
        %1411 = vmatprep.subr.bf16.mxu0 0
        %1412 = vmatpush1.bf16.msra.mxu0 0
        %1413 = vmatprep.subr.bf16.mxu0 0
        %1414 = vmatpush1.bf16.msra.mxu0 0
        %1415 = vmatprep.subr.bf16.mxu0 0
        %1416 = vmatpush1.bf16.msra.mxu0 0
        %1417 = vmatprep.subr.bf16.mxu0 0
        %1418 = vmatpush1.bf16.msra.mxu0 0
        %1419 = vmatprep.subr.bf16.mxu0 0
        %1420 = vmatpush1.bf16.msra.mxu0 0
        %1421 = vmatprep.subr.bf16.mxu0 0
        %1422 = vmatpush1.bf16.msra.mxu0 0
        %1423 = vmatprep.subr.bf16.mxu0 0
        %1424 = vmatpush1.bf16.msra.mxu0 0
        %1425 = vmatprep.subr.bf16.mxu0 0
        %1426 = vmatpush1.bf16.msra.mxu0 0
        %1427 = vmatprep.subr.bf16.mxu0 0
        %1428 = vmatpush1.bf16.msra.mxu0 0
        %1429 = vmatprep.subr.bf16.mxu0 0
        %1430 = vmatpush1.bf16.msra.mxu0 0
        %1431 = vmatprep.subr.bf16.mxu0 0
        %1432 = vmatpush1.bf16.msra.mxu0 0
        %1433 = vmatprep.mubr.bf16.mxu0 0
        %1434 = vmatmul.mubr.bf16.gmra.mrb[0].mxu0 %v1399
        %v1435 = vpop.f32.mrb[0].mxu0
        %v1436 = vadd.f32 0.0, %v1435
        %v1437 = vpop.f32.mrb[0].mxu0
        %v1438 = vpop.f32.mrb[0].mxu0
        %v1439 = vadd.f32 0.0, %v1438
        %v1440 = vpop.f32.mrb[0].mxu0
        %1441 = vdwg.mxu0
        %v1442 = vadd.f32 %v1395, %v1436
        %v1443 = vadd.f32 %v1396, %v1439
        %1444 = vst [vmem:[#allocation3 + $0x10] sm:$0xff] %v1442
        %1445 = vst [vmem:[#allocation3 + $0x30] sm:$0xff] %v1443
        %v1446 = vld [vmem:[#allocation2 + $0x18] sm:$0xff]
        %1447 = vmatprep.subr.bf16.mxu0 0
        %1448 = vmatpush1.bf16.xpose.msra.mxu0 %v976
        %1449 = vmatprep.subr.bf16.mxu0 0
        %1450 = vmatpush1.bf16.xpose.msra.mxu0 0
        %1451 = vmatprep.subr.bf16.mxu0 0
        %1452 = vmatpush1.bf16.xpose.msra.mxu0 0
        %1453 = vmatprep.subr.bf16.mxu0 0
        %1454 = vmatpush1.bf16.xpose.msra.mxu0 0
        %1455 = vmatprep.subr.bf16.mxu0 0
        %1456 = vmatpush1.bf16.xpose.msra.mxu0 0
        %1457 = vmatprep.subr.bf16.mxu0 0
        %1458 = vmatpush1.bf16.xpose.msra.mxu0 0
        %1459 = vmatprep.subr.bf16.mxu0 0
        %1460 = vmatpush1.bf16.xpose.msra.mxu0 0
        %1461 = vmatprep.subr.bf16.mxu0 0
        %1462 = vmatpush1.bf16.xpose.msra.mxu0 0
        %1463 = vmatprep.subr.bf16.mxu0 0
        %1464 = vmatpush1.bf16.xpose.msra.mxu0 0
        %1465 = vmatprep.subr.bf16.mxu0 0
        %1466 = vmatpush1.bf16.xpose.msra.mxu0 0
        %1467 = vmatprep.subr.bf16.mxu0 0
        %1468 = vmatpush1.bf16.xpose.msra.mxu0 0
        %1469 = vmatprep.subr.bf16.mxu0 0
        %1470 = vmatpush1.bf16.xpose.msra.mxu0 0
        %1471 = vmatprep.subr.bf16.mxu0 0
        %1472 = vmatpush1.bf16.xpose.msra.mxu0 0
        %1473 = vmatprep.subr.bf16.mxu0 0
        %1474 = vmatpush1.bf16.xpose.msra.mxu0 0
        %1475 = vmatprep.subr.bf16.mxu0 0
        %1476 = vmatpush1.bf16.xpose.msra.mxu0 0
        %1477 = vmatprep.subr.bf16.mxu0 0
        %1478 = vmatpush1.bf16.xpose.msra.mxu0 0
        %1479 = vmatprep.mubr.bf16.mxu0 0
        %1480 = vmatmul.mubr.bf16.gmra.mrb[0].mxu0 %v1446
        %v1481 = vpop.f32.mrb[0].mxu0
        %v1482 = vadd.f32 0.0, %v1481
        %v1483 = vpop.f32.mrb[0].mxu0
        %v1484 = vpop.f32.mrb[0].mxu0
        %v1485 = vadd.f32 0.0, %v1484
        %v1486 = vpop.f32.mrb[0].mxu0
        %1487 = vdwg.mxu0
        %s1488 = scalar_lea.vmem [#allocation4], 48
        %v1489 = vld [vmem:[%s1488] sm:$0xff]
        %v1490 = vld [vmem:[%s1488 + $0x8] sm:$0xff]
        %s1491 = scalar_lea.vmem [#allocation5], 48
        %v1492 = vld [vmem:[%s1491] sm:$0xff]
        %v1493 = vld [vmem:[%s1491 + $0x8] sm:$0xff]
        %v1494 = vsel %vm1027, %v1482, -inf
        %1495 = vmax.xlane.f32.xlu0 %v1494
        %v1496 = vpop.xlane.xlu0 %1495
        %v1497 = vsel %vm1027, %v1485, -inf
        %1498 = vmax.xlane.f32.xlu0 %v1497
        %v1499 = vpop.xlane.xlu0 %1498
        %v1500 = vmax.f32 %v1489, %v1496
        %v1501 = vmax.f32 %v1490, %v1499
        %v1502 = vsub.f32 %v1489, %v1500
        %v1503 = vsub.f32 %v1490, %v1501
        %v1504 = vmul.f32 %v1502, 1.442695
        %v1505 = vpow.pop %v1504
        %v1506 = vmul.f32 %v1503, 1.442695
        %v1507 = vpow.pop %v1506
        %1509 = vset.pattern.permute.xlu0 0
        %1510 = vperm.xlu0 %1509, %v1500
        %v1511 = vpop.permute.xlu0 %1510
        %1514 = vset.pattern.permute.xlu0 0
        %1515 = vperm.xlu0 %1514, %v1501
        %v1516 = vpop.permute.xlu0 %1515
        %v1518 = vsub.f32 %v1482, %v1511
        %v1519 = vsub.f32 %v1485, %v1516
        %v1520 = vmul.f32 %v1518, 1.442695
        %v1521 = vpow.pop %v1520
        %v1522 = vmul.f32 %v1519, 1.442695
        %v1523 = vpow.pop %v1522
        %v1524 = vmul.f32 %v1505, %v1492
        %v1525 = vmul.f32 %v1507, %v1493
        %v1526 = vsel %vm1027, %v1521, 0.0
        %1527 = vadd.xlane.f32.xlu0 %v1526
        %v1528 = vpop.xlane.xlu0 %1527
        %v1529 = vsel %vm1027, %v1523, 0.0
        %1530 = vadd.xlane.f32.xlu0 %v1529
        %v1531 = vpop.xlane.xlu0 %1530
        %v1532 = vadd.f32 %v1524, %v1528
        %v1533 = vadd.f32 %v1525, %v1531
        %1534 = vst.msk [vmem:[%s1491] sm:$0xff] %vm1068, %v1532
        %1535 = vst.msk [vmem:[%s1491 + $0x8] sm:$0xff] %vm1068, %v1533
        %1536 = vst.msk [vmem:[%s1488] sm:$0xff] %vm1068, %v1500
        %1537 = vst.msk [vmem:[%s1488 + $0x8] sm:$0xff] %vm1068, %v1501
        %v1538 = vld [vmem:[#allocation3 + $0x18] sm:$0xff]
        %v1539 = vld [vmem:[#allocation3 + $0x38] sm:$0xff]
        %1541 = vset.pattern.permute.xlu0 0
        %1542 = vperm.xlu0 %1541, %v1505
        %v1543 = vpop.permute.xlu0 %1542
        %1546 = vset.pattern.permute.xlu0 0
        %1547 = vperm.xlu0 %1546, %v1507
        %v1548 = vpop.permute.xlu0 %1547
        %v1550 = vmul.f32 %v1538, %v1543
        %v1551 = vmul.f32 %v1539, %v1548
        %v1552 = vpack.c.bf16 %v1523, %v1521
        %v1554 = vsel %vm1027, %v1552, 0
        %1556 = vmatprep.subr.bf16.mxu0 0
        %1557 = vmatpush1.bf16.msra.mxu0 %v980
        %1558 = vmatprep.subr.bf16.mxu0 0
        %1559 = vmatpush1.bf16.msra.mxu0 0
        %1560 = vmatprep.subr.bf16.mxu0 0
        %1561 = vmatpush1.bf16.msra.mxu0 0
        %1562 = vmatprep.subr.bf16.mxu0 0
        %1563 = vmatpush1.bf16.msra.mxu0 0
        %1564 = vmatprep.subr.bf16.mxu0 0
        %1565 = vmatpush1.bf16.msra.mxu0 0
        %1566 = vmatprep.subr.bf16.mxu0 0
        %1567 = vmatpush1.bf16.msra.mxu0 0
        %1568 = vmatprep.subr.bf16.mxu0 0
        %1569 = vmatpush1.bf16.msra.mxu0 0
        %1570 = vmatprep.subr.bf16.mxu0 0
        %1571 = vmatpush1.bf16.msra.mxu0 0
        %1572 = vmatprep.subr.bf16.mxu0 0
        %1573 = vmatpush1.bf16.msra.mxu0 0
        %1574 = vmatprep.subr.bf16.mxu0 0
        %1575 = vmatpush1.bf16.msra.mxu0 0
        %1576 = vmatprep.subr.bf16.mxu0 0
        %1577 = vmatpush1.bf16.msra.mxu0 0
        %1578 = vmatprep.subr.bf16.mxu0 0
        %1579 = vmatpush1.bf16.msra.mxu0 0
        %1580 = vmatprep.subr.bf16.mxu0 0
        %1581 = vmatpush1.bf16.msra.mxu0 0
        %1582 = vmatprep.subr.bf16.mxu0 0
        %1583 = vmatpush1.bf16.msra.mxu0 0
        %1584 = vmatprep.subr.bf16.mxu0 0
        %1585 = vmatpush1.bf16.msra.mxu0 0
        %1586 = vmatprep.subr.bf16.mxu0 0
        %1587 = vmatpush1.bf16.msra.mxu0 0
        %1588 = vmatprep.mubr.bf16.mxu0 0
        %1589 = vmatmul.mubr.bf16.gmra.mrb[0].mxu0 %v1554
        %v1590 = vpop.f32.mrb[0].mxu0
        %v1591 = vadd.f32 0.0, %v1590
        %v1592 = vpop.f32.mrb[0].mxu0
        %v1593 = vpop.f32.mrb[0].mxu0
        %v1594 = vadd.f32 0.0, %v1593
        %v1595 = vpop.f32.mrb[0].mxu0
        %1596 = vdwg.mxu0
        %v1597 = vadd.f32 %v1550, %v1591
        %v1598 = vadd.f32 %v1551, %v1594
        %1599 = vst [vmem:[#allocation3 + $0x18] sm:$0xff] %v1597
        %1600 = vst [vmem:[#allocation3 + $0x38] sm:$0xff] %v1598
        %p1601 = scmp.eq.s32.totalorder %s36, 1
        // Predicated region
        $region77: #{tpu_custom_call.1} parent=51 // pred_check
          %p1602 = pneg %p1601
        $region78: #{tpu_custom_call.1} parent=51 // pred_check_branch
          %1604 = sbr.rel (%p1602) target = $region80
        $region79: #{tpu_custom_call.1} parent=51 // pred_region
          %v1605 = vld [vmem:[#allocation5] sm:$0xff]
          %v1606 = vld [vmem:[#allocation5 + $0x8] sm:$0xff]
          %v1607 = vrcp.pop %v1605
          %v1608 = vrcp.pop %v1606
          %v1609 = vld [vmem:[#allocation3] sm:$0xff]
          %v1610 = vld [vmem:[#allocation3 + $0x20] sm:$0xff]
          %1612 = vset.pattern.permute.xlu0 0
          %1613 = vperm.xlu0 %1612, %v1607
          %v1614 = vpop.permute.xlu0 %1613
          %1617 = vset.pattern.permute.xlu0 0
          %1618 = vperm.xlu0 %1617, %v1608
          %v1619 = vpop.permute.xlu0 %1618
          %v1621 = vmul.f32 %v1609, %v1614
          %v1622 = vmul.f32 %v1610, %v1619
          %v1623 = vpack.c.bf16 %v1622, %v1621
          %v1624 = vld [vmem:[%s1181] sm:$0xff]
          %v1625 = vld [vmem:[%s1181 + $0x8] sm:$0xff]
          %v1626 = vrcp.pop %v1624
          %v1627 = vrcp.pop %v1625
          %v1628 = vld [vmem:[#allocation3 + $0x8] sm:$0xff]
          %v1629 = vld [vmem:[#allocation3 + $0x28] sm:$0xff]
          %1631 = vset.pattern.permute.xlu0 0
          %1632 = vperm.xlu0 %1631, %v1626
          %v1633 = vpop.permute.xlu0 %1632
          %1636 = vset.pattern.permute.xlu0 0
          %1637 = vperm.xlu0 %1636, %v1627
          %v1638 = vpop.permute.xlu0 %1637
          %v1640 = vmul.f32 %v1628, %v1633
          %v1641 = vmul.f32 %v1629, %v1638
          %v1642 = vpack.c.bf16 %v1641, %v1640
          %v1643 = vld [vmem:[%s1336] sm:$0xff]
          %v1644 = vld [vmem:[%s1336 + $0x8] sm:$0xff]
          %v1645 = vrcp.pop %v1643
          %v1646 = vrcp.pop %v1644
          %v1647 = vld [vmem:[#allocation3 + $0x10] sm:$0xff]
          %v1648 = vld [vmem:[#allocation3 + $0x30] sm:$0xff]
          %1650 = vset.pattern.permute.xlu0 0
          %1651 = vperm.xlu0 %1650, %v1645
          %v1652 = vpop.permute.xlu0 %1651
          %1655 = vset.pattern.permute.xlu0 0
          %1656 = vperm.xlu0 %1655, %v1646
          %v1657 = vpop.permute.xlu0 %1656
          %v1659 = vmul.f32 %v1647, %v1652
          %v1660 = vmul.f32 %v1648, %v1657
          %v1661 = vpack.c.bf16 %v1660, %v1659
          %v1662 = vld [vmem:[%s1491] sm:$0xff]
          %v1663 = vld [vmem:[%s1491 + $0x8] sm:$0xff]
          %v1664 = vrcp.pop %v1662
          %v1665 = vrcp.pop %v1663
          %v1666 = vld [vmem:[#allocation3 + $0x18] sm:$0xff]
          %v1667 = vld [vmem:[#allocation3 + $0x38] sm:$0xff]
          %1669 = vset.pattern.permute.xlu0 0
          %1670 = vperm.xlu0 %1669, %v1664
          %v1671 = vpop.permute.xlu0 %1670
          %1674 = vset.pattern.permute.xlu0 0
          %1675 = vperm.xlu0 %1674, %v1665
          %v1676 = vpop.permute.xlu0 %1675
          %v1678 = vmul.f32 %v1666, %v1671
          %v1679 = vmul.f32 %v1667, %v1676
          %v1680 = vpack.c.bf16 %v1679, %v1678
          %v1681 = vld [vmem:[#allocation14] sm:$0xf]
          %v1682 = vld [vmem:[#allocation14 + $0x4] sm:$0xf]
          %v1683 = vld [vmem:[#allocation14 + $0x8] sm:$0xf]
          %v1684 = vld [vmem:[#allocation14 + $0xc] sm:$0xf]
          %v1685 = vld [vmem:[#allocation14 + $0x10] sm:$0xf]
          %v1686 = vld [vmem:[#allocation14 + $0x14] sm:$0xf]
          %v1687 = vld [vmem:[#allocation14 + $0x18] sm:$0xf]
          %v1688 = vld [vmem:[#allocation14 + $0x1c] sm:$0xf]
          %v1689 = vld [vmem:[#allocation14 + $0x20] sm:$0xf]
          %v1690 = vld [vmem:[#allocation14 + $0x24] sm:$0xf]
          %v1691 = vld [vmem:[#allocation14 + $0x28] sm:$0xf]
          %v1692 = vld [vmem:[#allocation14 + $0x2c] sm:$0xf]
          %v1693 = vld [vmem:[#allocation14 + $0x30] sm:$0xf]
          %v1694 = vld [vmem:[#allocation14 + $0x34] sm:$0xf]
          %v1695 = vld [vmem:[#allocation14 + $0x38] sm:$0xf]
          %v1696 = vld [vmem:[#allocation14 + $0x3c] sm:$0xf]
          %v1697 = vld [vmem:[#allocation14 + $0x40] sm:$0xf]
          %v1698 = vld [vmem:[#allocation14 + $0x44] sm:$0xf]
          %v1699 = vld [vmem:[#allocation14 + $0x48] sm:$0xf]
          %v1700 = vld [vmem:[#allocation14 + $0x4c] sm:$0xf]
          %v1701 = vld [vmem:[#allocation14 + $0x50] sm:$0xf]
          %v1702 = vld [vmem:[#allocation14 + $0x54] sm:$0xf]
          %v1703 = vld [vmem:[#allocation14 + $0x58] sm:$0xf]
          %v1704 = vld [vmem:[#allocation14 + $0x5c] sm:$0xf]
          %v1705 = vld [vmem:[#allocation14 + $0x60] sm:$0xf]
          %v1706 = vld [vmem:[#allocation14 + $0x64] sm:$0xf]
          %v1707 = vld [vmem:[#allocation14 + $0x68] sm:$0xf]
          %v1708 = vld [vmem:[#allocation14 + $0x6c] sm:$0xf]
          %v1709 = vld [vmem:[#allocation14 + $0x70] sm:$0xf]
          %v1710 = vld [vmem:[#allocation14 + $0x74] sm:$0xf]
          %v1711 = vld [vmem:[#allocation14 + $0x78] sm:$0xf]
          %v1712 = vld [vmem:[#allocation14 + $0x7c] sm:$0xf]
          %v1713 = vld [vmem:[#allocation14 + $0x80] sm:$0xf]
          %v1714 = vld [vmem:[#allocation14 + $0x84] sm:$0xf]
          %v1715 = vld [vmem:[#allocation14 + $0x88] sm:$0xf]
          %v1716 = vld [vmem:[#allocation14 + $0x8c] sm:$0xf]
          %v1717 = vld [vmem:[#allocation14 + $0x90] sm:$0xf]
          %v1718 = vld [vmem:[#allocation14 + $0x94] sm:$0xf]
          %v1719 = vld [vmem:[#allocation14 + $0x98] sm:$0xf]
          %v1720 = vld [vmem:[#allocation14 + $0x9c] sm:$0xf]
          %v1721 = vld [vmem:[#allocation14 + $0xa0] sm:$0xf]
          %v1722 = vld [vmem:[#allocation14 + $0xa4] sm:$0xf]
          %v1723 = vld [vmem:[#allocation14 + $0xa8] sm:$0xf]
          %v1724 = vld [vmem:[#allocation14 + $0xac] sm:$0xf]
          %v1725 = vld [vmem:[#allocation14 + $0xb0] sm:$0xf]
          %v1726 = vld [vmem:[#allocation14 + $0xb4] sm:$0xf]
          %v1727 = vld [vmem:[#allocation14 + $0xb8] sm:$0xf]
          %v1728 = vld [vmem:[#allocation14 + $0xbc] sm:$0xf]
          %v1729 = vld [vmem:[#allocation14 + $0xc0] sm:$0xf]
          %v1730 = vld [vmem:[#allocation14 + $0xc4] sm:$0xf]
          %v1731 = vld [vmem:[#allocation14 + $0xc8] sm:$0xf]
          %v1732 = vld [vmem:[#allocation14 + $0xcc] sm:$0xf]
          %v1733 = vld [vmem:[#allocation14 + $0xd0] sm:$0xf]
          %v1734 = vld [vmem:[#allocation14 + $0xd4] sm:$0xf]
          %v1735 = vld [vmem:[#allocation14 + $0xd8] sm:$0xf]
          %v1736 = vld [vmem:[#allocation14 + $0xdc] sm:$0xf]
          %v1737 = vld [vmem:[#allocation14 + $0xe0] sm:$0xf]
          %v1738 = vld [vmem:[#allocation14 + $0xe4] sm:$0xf]
          %v1739 = vld [vmem:[#allocation14 + $0xe8] sm:$0xf]
          %v1740 = vld [vmem:[#allocation14 + $0xec] sm:$0xf]
          %v1741 = vld [vmem:[#allocation14 + $0xf0] sm:$0xf]
          %v1742 = vld [vmem:[#allocation14 + $0xf4] sm:$0xf]
          %v1743 = vld [vmem:[#allocation14 + $0xf8] sm:$0xf]
          %v1744 = vld [vmem:[#allocation14 + $0xfc] sm:$0xf]
          %v1745 = vld [vmem:[%s7] sm:$0x1]
          %v1747 = vlaneseq
          %v1748 = vshrl.u32 %v1747, 7
          %v1749 = vsub.s32 0, %v1748
          %v1750 = vrot.slane %v1745, %v1749
          %v1816 = vunpack.c.l.b16 %v1681
          %v1817 = vunpack.c.l.b16 %v1682
          %v1818 = vunpack.c.l.b16 %v1683
          %v1819 = vunpack.c.l.b16 %v1684
          %v1820 = vunpack.c.l.b16 %v1685
          %v1821 = vunpack.c.l.b16 %v1686
          %v1822 = vunpack.c.l.b16 %v1687
          %v1823 = vunpack.c.l.b16 %v1688
          %v1824 = vunpack.c.l.b16 %v1689
          %v1825 = vunpack.c.l.b16 %v1690
          %v1826 = vunpack.c.l.b16 %v1691
          %v1827 = vunpack.c.l.b16 %v1692
          %v1828 = vunpack.c.l.b16 %v1693
          %v1829 = vunpack.c.l.b16 %v1694
          %v1830 = vunpack.c.l.b16 %v1695
          %v1831 = vunpack.c.l.b16 %v1696
          %v1832 = vunpack.c.l.b16 %v1697
          %v1833 = vunpack.c.l.b16 %v1698
          %v1834 = vunpack.c.l.b16 %v1699
          %v1835 = vunpack.c.l.b16 %v1700
          %v1836 = vunpack.c.l.b16 %v1701
          %v1837 = vunpack.c.l.b16 %v1702
          %v1838 = vunpack.c.l.b16 %v1703
          %v1839 = vunpack.c.l.b16 %v1704
          %v1840 = vunpack.c.l.b16 %v1705
          %v1841 = vunpack.c.l.b16 %v1706
          %v1842 = vunpack.c.l.b16 %v1707
          %v1843 = vunpack.c.l.b16 %v1708
          %v1844 = vunpack.c.l.b16 %v1709
          %v1845 = vunpack.c.l.b16 %v1710
          %v1846 = vunpack.c.l.b16 %v1711
          %v1847 = vunpack.c.l.b16 %v1712
          %v1848 = vunpack.c.l.b16 %v1713
          %v1849 = vunpack.c.l.b16 %v1714
          %v1850 = vunpack.c.l.b16 %v1715
          %v1851 = vunpack.c.l.b16 %v1716
          %v1852 = vunpack.c.l.b16 %v1717
          %v1853 = vunpack.c.l.b16 %v1718
          %v1854 = vunpack.c.l.b16 %v1719
          %v1855 = vunpack.c.l.b16 %v1720
          %v1856 = vunpack.c.l.b16 %v1721
          %v1857 = vunpack.c.l.b16 %v1722
          %v1858 = vunpack.c.l.b16 %v1723
          %v1859 = vunpack.c.l.b16 %v1724
          %v1860 = vunpack.c.l.b16 %v1725
          %v1861 = vunpack.c.l.b16 %v1726
          %v1862 = vunpack.c.l.b16 %v1727
          %v1863 = vunpack.c.l.b16 %v1728
          %v1864 = vunpack.c.l.b16 %v1729
          %v1865 = vunpack.c.l.b16 %v1730
          %v1866 = vunpack.c.l.b16 %v1731
          %v1867 = vunpack.c.l.b16 %v1732
          %v1868 = vunpack.c.l.b16 %v1733
          %v1869 = vunpack.c.l.b16 %v1734
          %v1870 = vunpack.c.l.b16 %v1735
          %v1871 = vunpack.c.l.b16 %v1736
          %v1872 = vunpack.c.l.b16 %v1737
          %v1873 = vunpack.c.l.b16 %v1738
          %v1874 = vunpack.c.l.b16 %v1739
          %v1875 = vunpack.c.l.b16 %v1740
          %v1876 = vunpack.c.l.b16 %v1741
          %v1877 = vunpack.c.l.b16 %v1742
          %v1878 = vunpack.c.l.b16 %v1743
          %v1879 = vunpack.c.l.b16 %v1744
          %v1880 = vpack.c.b16 %v1817, %v1816
          %v1881 = vpack.c.b16 %v1819, %v1818
          %v1882 = vpack.c.b16 %v1821, %v1820
          %v1883 = vpack.c.b16 %v1823, %v1822
          %v1884 = vpack.c.b16 %v1825, %v1824
          %v1885 = vpack.c.b16 %v1827, %v1826
          %v1886 = vpack.c.b16 %v1829, %v1828
          %v1887 = vpack.c.b16 %v1831, %v1830
          %v1888 = vpack.c.b16 %v1833, %v1832
          %v1889 = vpack.c.b16 %v1835, %v1834
          %v1890 = vpack.c.b16 %v1837, %v1836
          %v1891 = vpack.c.b16 %v1839, %v1838
          %v1892 = vpack.c.b16 %v1841, %v1840
          %v1893 = vpack.c.b16 %v1843, %v1842
          %v1894 = vpack.c.b16 %v1845, %v1844
          %v1895 = vpack.c.b16 %v1847, %v1846
          %v1896 = vpack.c.b16 %v1849, %v1848
          %v1897 = vpack.c.b16 %v1851, %v1850
          %v1898 = vpack.c.b16 %v1853, %v1852
          %v1899 = vpack.c.b16 %v1855, %v1854
          %v1900 = vpack.c.b16 %v1857, %v1856
          %v1901 = vpack.c.b16 %v1859, %v1858
          %v1902 = vpack.c.b16 %v1861, %v1860
          %v1903 = vpack.c.b16 %v1863, %v1862
          %v1904 = vpack.c.b16 %v1865, %v1864
          %v1905 = vpack.c.b16 %v1867, %v1866
          %v1906 = vpack.c.b16 %v1869, %v1868
          %v1907 = vpack.c.b16 %v1871, %v1870
          %v1908 = vpack.c.b16 %v1873, %v1872
          %v1909 = vpack.c.b16 %v1875, %v1874
          %v1910 = vpack.c.b16 %v1877, %v1876
          %v1911 = vpack.c.b16 %v1879, %v1878
          %1944 = vmatprep.subr.bf16.mxu0 0
          %1945 = vmatpush1.bf16.msra.mxu0 %v1880
          %1946 = vmatprep.subr.bf16.mxu0 0
          %1947 = vmatpush1.bf16.msra.mxu0 %v1881
          %1948 = vmatprep.subr.bf16.mxu0 0
          %1949 = vmatpush1.bf16.msra.mxu0 %v1882
          %1950 = vmatprep.subr.bf16.mxu0 0
          %1951 = vmatpush1.bf16.msra.mxu0 %v1883
          %1952 = vmatprep.subr.bf16.mxu0 0
          %1953 = vmatpush1.bf16.msra.mxu0 %v1884
          %1954 = vmatprep.subr.bf16.mxu0 0
          %1955 = vmatpush1.bf16.msra.mxu0 %v1885
          %1956 = vmatprep.subr.bf16.mxu0 0
          %1957 = vmatpush1.bf16.msra.mxu0 %v1886
          %1958 = vmatprep.subr.bf16.mxu0 0
          %1959 = vmatpush1.bf16.msra.mxu0 %v1887
          %1960 = vmatprep.subr.bf16.mxu0 0
          %1961 = vmatpush1.bf16.msra.mxu0 %v1888
          %1962 = vmatprep.subr.bf16.mxu0 0
          %1963 = vmatpush1.bf16.msra.mxu0 %v1889
          %1964 = vmatprep.subr.bf16.mxu0 0
          %1965 = vmatpush1.bf16.msra.mxu0 %v1890
          %1966 = vmatprep.subr.bf16.mxu0 0
          %1967 = vmatpush1.bf16.msra.mxu0 %v1891
          %1968 = vmatprep.subr.bf16.mxu0 0
          %1969 = vmatpush1.bf16.msra.mxu0 %v1892
          %1970 = vmatprep.subr.bf16.mxu0 0
          %1971 = vmatpush1.bf16.msra.mxu0 %v1893
          %1972 = vmatprep.subr.bf16.mxu0 0
          %1973 = vmatpush1.bf16.msra.mxu0 %v1894
          %1974 = vmatprep.subr.bf16.mxu0 0
          %1975 = vmatpush1.bf16.msra.mxu0 %v1895
          %1976 = vmatprep.mubr.bf16.mxu0 %v1642
          %1977 = vmatmul.mubr.bf16.gmra.mrb[0].mxu0 %v1623
          %v1978 = vpop.f32.mrb[0].mxu0
          %v1979 = vadd.f32 %v1750, %v1978
          %v1980 = vpop.f32.mrb[0].mxu0
          %v1981 = vpop.f32.mrb[0].mxu0
          %v1982 = vadd.f32 %v1750, %v1981
          %v1983 = vpop.f32.mrb[0].mxu0
          %1984 = vdwg.mxu0
          %1985 = vmatprep.subr.bf16.mxu0 0
          %1986 = vmatpush1.bf16.msra.mxu0 %v1896
          %1987 = vmatprep.subr.bf16.mxu0 0
          %1988 = vmatpush1.bf16.msra.mxu0 %v1897
          %1989 = vmatprep.subr.bf16.mxu0 0
          %1990 = vmatpush1.bf16.msra.mxu0 %v1898
          %1991 = vmatprep.subr.bf16.mxu0 0
          %1992 = vmatpush1.bf16.msra.mxu0 %v1899
          %1993 = vmatprep.subr.bf16.mxu0 0
          %1994 = vmatpush1.bf16.msra.mxu0 %v1900
          %1995 = vmatprep.subr.bf16.mxu0 0
          %1996 = vmatpush1.bf16.msra.mxu0 %v1901
          %1997 = vmatprep.subr.bf16.mxu0 0
          %1998 = vmatpush1.bf16.msra.mxu0 %v1902
          %1999 = vmatprep.subr.bf16.mxu0 0
          %2000 = vmatpush1.bf16.msra.mxu0 %v1903
          %2001 = vmatprep.subr.bf16.mxu0 0
          %2002 = vmatpush1.bf16.msra.mxu0 %v1904
          %2003 = vmatprep.subr.bf16.mxu0 0
          %2004 = vmatpush1.bf16.msra.mxu0 %v1905
          %2005 = vmatprep.subr.bf16.mxu0 0
          %2006 = vmatpush1.bf16.msra.mxu0 %v1906
          %2007 = vmatprep.subr.bf16.mxu0 0
          %2008 = vmatpush1.bf16.msra.mxu0 %v1907
          %2009 = vmatprep.subr.bf16.mxu0 0
          %2010 = vmatpush1.bf16.msra.mxu0 %v1908
          %2011 = vmatprep.subr.bf16.mxu0 0
          %2012 = vmatpush1.bf16.msra.mxu0 %v1909
          %2013 = vmatprep.subr.bf16.mxu0 0
          %2014 = vmatpush1.bf16.msra.mxu0 %v1910
          %2015 = vmatprep.subr.bf16.mxu0 0
          %2016 = vmatpush1.bf16.msra.mxu0 %v1911
          %2017 = vmatprep.mubr.bf16.mxu0 %v1680
          %2018 = vmatmul.mubr.bf16.gmra.mrb[0].mxu0 %v1661
          %v2019 = vpop.f32.mrb[0].mxu0
          %v2020 = vadd.f32 %v1979, %v2019
          %v2021 = vpop.f32.mrb[0].mxu0
          %v2022 = vpop.f32.mrb[0].mxu0
          %v2023 = vadd.f32 %v1982, %v2022
          %v2024 = vpop.f32.mrb[0].mxu0
          %2025 = vdwg.mxu0
          %2026 = vst [vmem:[%s435] sm:$0xff] %v2020
          %2027 = vst [vmem:[%s435 + $0x8] sm:$0xff] %v2023
        $region80: #{tpu_custom_call.1} parent=51 // pred_fallthru
          _
        %s2028 = sand.u32 %s240, 1
        %s2029 = scalar_lea.sflag [#allocation8], %s2028
        %s2030 = sand.u32 %s240, 1
        %s2031 = smul.addr %s2030, 16
        %s2032 = scalar_lea.vmem [#allocation15], %s2031
        // Predicated region
        $region81: #{tpu_custom_call.1} parent=51 // pred_check
          %p2033 = pneg %p250
        $region82: #{tpu_custom_call.1} parent=51 // pred_check_branch
          %2035 = sbr.rel (%p2033) target = $region84
        $region83: #{tpu_custom_call.1} parent=51 // pred_region
          %s2036 = smul.u32 2, %s35
          %s2038 = ssub.s32 256, 256
          %2039 = vsyncadd %s2029, %s2038
          %s2040 = smul.addr %s34, 4
          %s2041 = sadd.s32 %s2036, %s2040
          %s2042 = smul.addr %s2041, 128
          %s2043 = scalar_lea.hbm %s8, %s2042
          %s2044 = sshll.u32 %s2032, 4
          %s2045 = int_to_ptr.vmem [resolvable:$true] %s2044
          %2050 = dma.vmem_to_hbm [thread:$0]  %s2045, 256, %s2043, %s2029, 128, 128, 8
        $region84: #{tpu_custom_call.1} parent=51 // pred_fallthru
          _
      $region52: #{tpu_custom_call.1} parent=5 // pred_fallthru
        _
      %p2051 = scmp.le.s32.totalorder 2, %s24
      // Predicated region
      $region85: #{tpu_custom_call.1} parent=5 // pred_check
        %p2052 = pneg %p2051
      $region86: #{tpu_custom_call.1} parent=5 // pred_check_branch
        %2054 = sbr.rel (%p2052) target = $region88
      $region87: #{tpu_custom_call.1} parent=5 // pred_region
        %s2055 = ssub.s32 %s24, 2
        // Predicated region
        $region89: #{tpu_custom_call.1} parent=87 // pred_check
          %p2056 = pneg %p256
        $region90: #{tpu_custom_call.1} parent=87 // pred_check_branch
          %2058 = sbr.rel (%p2056) target = $region92
        $region91: #{tpu_custom_call.1} parent=87 // pred_region
          %s2059 = sand.u32 %s241, 1
          %s2060 = scalar_lea.sflag [#allocation8], %s2059
          %s2061 = sand.u32 %s241, 1
          %s2062 = smul.addr %s2061, 16
          %s2063 = scalar_lea.vmem [#allocation15], %s2062
          %2064 = dma.done %s2060, 256
        $region92: #{tpu_custom_call.1} parent=87 // pred_fallthru
          _
      $region88: #{tpu_custom_call.1} parent=5 // pred_fallthru
        _
    $region6: #{tpu_custom_call.1} parent=1 // loop_footer
      %s28 = sadd.s32 1, %s24
    $region7: #{tpu_custom_call.1} parent=1 // loop_footer_branch
      %23 = sbr.rel target = $region3
    $region8: #{tpu_custom_call.1} parent=1 // loop_exit
      _
    %2065 = vsyncpa [#allocation7], 1
    %s2066 = scalar_lea.sflag [#allocation7], 1
    %2067 = vsyncpa %s2066, 1
    %2068 = vsyncpa [#allocation10], 1
    %s2069 = scalar_lea.sflag [#allocation10], 1
    %2070 = vsyncpa %s2069, 1
    %2071 = vsyncpa [#allocation13], 1
    %2072 = vsyncpa [#allocation8], 1
    %s2073 = scalar_lea.sflag [#allocation8], 1
    %2074 = vsyncpa %s2073, 1

</llo_original>
